<compile_context>
chip_gen: v7x
topology: tpu7x:2x2x1
jax: 0.10.0
libtpu: 0.0.40
codegen_flags: <defaults>
</compile_context>

<pallas_src>
import functools

import jax
import jax.numpy as jnp
from jax.experimental import pallas as pl
from jax.experimental.pallas import tpu as pltpu


def _round_up(x, m):
    return -(-x // m) * m


def _fire_kernel(x_ref, wsq_ref, wbig_ref, bbig_ref, out_ref, sp_ref, patch_ref,
                 *, Hb, Wp, Csq, sp_rows, row_align):
    """One (batch item, row block) grid step.

    x_ref    : (XR, Cin+1)        padded image (flat rows, channels+indicator),
                                  resident across the row-block grid axis
    wsq_ref  : (Cin+1, Csq)       squeeze 1x1 weight with bias folded in last row
    wbig_ref : (9*Csq, Cout)      fused im2col expand weight (e1 in center tap)
    bbig_ref : (1, Cout)          concat(b_e1, b_e3), f32
    out_ref  : (Hb*Wp, Cout)      output row block (padded-width layout)
    sp_ref   : (sp_rows, Csq)     squeeze activations, flat padded layout
    patch_ref: (Hb*Wp, 9*Csq)     im2col patches scratch
    """
    r = pl.program_id(1)
    start = pl.multiple_of(r * (Hb * Wp), row_align)

    # --- squeeze (1x1 conv + bias + ReLU): ONE matmul over the whole padded
    #     row slab; pad pixels come out exactly 0 via the indicator channel.
    xb = x_ref[pl.ds(start, sp_rows), :]
    s = jnp.dot(xb, wsq_ref[...], preferred_element_type=jnp.float32)
    s = jnp.maximum(s, 0.0)
    sp_ref[...] = s.astype(sp_ref.dtype)          # single contiguous store

    # --- im2col: 9 contiguous sublane-offset slices of the flat scratch,
    #     written directly into the patches scratch at lane offsets.
    M = Hb * Wp
    for dy in range(3):
        for dx in range(3):
            t = dy * 3 + dx
            off = dy * Wp + dx
            patch_ref[:, t * Csq:(t + 1) * Csq] = sp_ref[off:off + M, :]

    # --- single fused expand matmul [expand1x1 | expand3x3] + f32 bias + ReLU,
    #     single lane-dense store of the concatenated output block.
    out = jnp.dot(patch_ref[...], wbig_ref[...], preferred_element_type=jnp.float32)
    out_ref[...] = jnp.maximum(out + bbig_ref[...], 0.0).astype(out_ref.dtype)


def _padded_tile_bytes(rows, cols, itemsize):
    return _round_up(max(rows, 1), 8) * _round_up(max(cols, 1), 128) * itemsize


def fire_forward(x_nchw, w_sq, b_sq, w_e1, b_e1, w_e3, b_e3,
                 *, compute_dtype=jnp.bfloat16, row_block=8):
    """x_nchw: (N, Cin, H, W); weights in PyTorch OIHW layout. Returns NCHW."""
    N, Cin, H, W = x_nchw.shape
    Csq = w_sq.shape[0]
    Ce1 = w_e1.shape[0]
    Ce3 = w_e3.shape[0]
    Cout = Ce1 + Ce3
    out_dtype = x_nchw.dtype

    # --- row blocking (cdiv-based; last block handled by wrapper padding) ---
    Hb = min(row_block, H)
    NRB = -(-H // Hb)                      # >= 2 for H >= 16 (feeds both TCs on v7x)
    Hpad = NRB * Hb
    Wp = W + 2                             # padded width (3x3 conv halo columns)
    M = Hb * Wp                            # matmul rows per step (padded-width layout)
    sp_rows = _round_up((Hb + 2) * Wp + 2, 8)      # +2: flat-im2col tail overrun
    XR = _round_up((Hpad - Hb) * Wp + sp_rows, 8)  # padded flat rows of x
    row_align = 128 if M % 128 == 0 else (8 if M % 8 == 0 else 1)

    # ---- layout plumbing (wrapper-side, plain XLA) ----
    # Padded NHWC image with an indicator channel: real pixels carry 1.0 in
    # channel Cin (bias row of the squeeze weight), pad pixels are all-zero.
    x_nhwc = jnp.transpose(x_nchw, (0, 2, 3, 1)).astype(compute_dtype)
    xp = jnp.zeros((N, Hpad + 2, Wp, Cin + 1), compute_dtype)
    xp = xp.at[:, 1:H + 1, 1:W + 1, :Cin].set(x_nhwc)
    xp = xp.at[:, 1:H + 1, 1:W + 1, Cin].set(1.0)
    xp_flat = xp.reshape(N, (Hpad + 2) * Wp, Cin + 1)
    xp_flat = jnp.pad(xp_flat, ((0, 0), (0, XR - (Hpad + 2) * Wp), (0, 0)))

    # Squeeze weight with bias folded in as the indicator-channel row.
    wsq_k = jnp.concatenate(
        [jnp.transpose(w_sq[:, :, 0, 0], (1, 0)), b_sq.reshape(1, Csq)],
        axis=0).astype(compute_dtype)                               # (Cin+1, Csq)

    # Fused im2col expand weight: K ordered as (dy, dx, csq); expand1x1 lives
    # in the center-tap rows of the first Ce1 output columns.
    we1_k = jnp.transpose(w_e1[:, :, 0, 0], (1, 0))                 # (Csq, Ce1)
    we3_k = jnp.transpose(w_e3, (2, 3, 1, 0))                       # (3,3,Csq,Ce3)
    w1_big = jnp.zeros((9 * Csq, Ce1), w_e1.dtype).at[4 * Csq:5 * Csq, :].set(we1_k)
    w3_big = we3_k.reshape(9 * Csq, Ce3)
    wbig_k = jnp.concatenate([w1_big, w3_big], axis=-1).astype(compute_dtype)
    bbig_k = jnp.concatenate([b_e1, b_e3]).reshape(1, Cout).astype(jnp.float32)

    kernel = functools.partial(_fire_kernel, Hb=Hb, Wp=Wp, Csq=Csq,
                               sp_rows=sp_rows, row_align=row_align)

    # VMEM budget from actual block sizes (double-buffered inputs/outputs).
    it = jnp.dtype(compute_dtype).itemsize
    ot = jnp.dtype(out_dtype).itemsize
    est = (2 * (_padded_tile_bytes(XR, Cin + 1, it)
                + _padded_tile_bytes(Cin + 1, Csq, it)
                + _padded_tile_bytes(9 * Csq, Cout, it)
                + _padded_tile_bytes(1, Cout, 4)
                + _padded_tile_bytes(M, Cout, ot))
           + _padded_tile_bytes(sp_rows, Csq, it)
           + _padded_tile_bytes(M, 9 * Csq, it))
    vmem_limit = min(max(2 * est + (2 << 20), 16 << 20), 64 << 20)

    out_flat = pl.pallas_call(
        kernel,
        out_shape=jax.ShapeDtypeStruct((N, NRB * M, Cout), out_dtype),
        grid=(N, NRB),
        in_specs=[
            # Full padded image per batch item; resident across the row axis.
            pl.BlockSpec((None, XR, Cin + 1), lambda n, r: (n, 0, 0)),
            pl.BlockSpec((Cin + 1, Csq), lambda n, r: (0, 0)),
            pl.BlockSpec((9 * Csq, Cout), lambda n, r: (0, 0)),
            pl.BlockSpec((1, Cout), lambda n, r: (0, 0)),
        ],
        out_specs=pl.BlockSpec((None, M, Cout), lambda n, r: (n, r, 0)),
        scratch_shapes=[pltpu.VMEM((sp_rows, Csq), compute_dtype),
                        pltpu.VMEM((M, 9 * Csq), compute_dtype)],
        compiler_params=pltpu.CompilerParams(
            dimension_semantics=("parallel", "parallel"),
            vmem_limit_bytes=vmem_limit),
    )(xp_flat, wsq_k, wbig_k, bbig_k)

    # Drop padded rows/columns and go back to NCHW.
    out = out_flat.reshape(N, Hpad, Wp, Cout)[:, :H, :W, :]
    return jnp.transpose(out, (0, 3, 1, 2))


def fire_reference(x, w_sq, b_sq, w_e1, b_e1, w_e3, b_e3):
    """Pure-JAX reference matching the PyTorch Fire module."""
    dn = ('NCHW', 'OIHW', 'NCHW')
    s = jax.lax.conv_general_dilated(x, w_sq, (1, 1), 'VALID',
                                     dimension_numbers=dn)
    s = jnp.maximum(s + b_sq[None, :, None, None], 0.0)
    e1 = jax.lax.conv_general_dilated(s, w_e1, (1, 1), 'VALID',
                                      dimension_numbers=dn)
    e1 = jnp.maximum(e1 + b_e1[None, :, None, None], 0.0)
    e3 = jax.lax.conv_general_dilated(s, w_e3, (1, 1), 'SAME',
                                      dimension_numbers=dn)
    e3 = jnp.maximum(e3 + b_e3[None, :, None, None], 0.0)
    return jnp.concatenate([e1, e3], axis=1)


if __name__ == "__main__":
    N, Cin, H, W = 2, 4, 16, 16
    Csq, Ce1, Ce3 = 8, 16, 16

    key = jax.random.PRNGKey(0)
    ks = jax.random.split(key, 7)
    x = jax.random.normal(ks[0], (N, Cin, H, W), jnp.float32)
    # deterministic synthetic parameters (PyTorch Conv2d OIHW layout)
    w_sq = jax.random.normal(ks[1], (Csq, Cin, 1, 1), jnp.float32) * 0.5
    b_sq = jax.random.normal(ks[2], (Csq,), jnp.float32) * 0.1
    w_e1 = jax.random.normal(ks[3], (Ce1, Csq, 1, 1), jnp.float32) * 0.5
    b_e1 = jax.random.normal(ks[4], (Ce1,), jnp.float32) * 0.1
    w_e3 = jax.random.normal(ks[5], (Ce3, Csq, 3, 3), jnp.float32) * 0.2
    b_e3 = jax.random.normal(ks[6], (Ce3,), jnp.float32) * 0.1

    ref = fire_reference(x, w_sq, b_sq, w_e1, b_e1, w_e3, b_e3)

    # 1) strict functional check with f32 compute (exact structure check)
    out_f32 = jax.block_until_ready(
        fire_forward(x, w_sq, b_sq, w_e1, b_e1, w_e3, b_e3,
                     compute_dtype=jnp.float32))
    assert out_f32.shape == (N, Ce1 + Ce3, H, W), out_f32.shape
    assert bool(jnp.allclose(out_f32, ref, atol=1e-4, rtol=1e-4)), \
        float(jnp.max(jnp.abs(out_f32 - ref)))

    # 2) default bf16 compute path (perf configuration); compared against a
    #    reference fed with bf16-rounded inputs, leaving only the (intentional)
    #    bf16 rounding of the intermediate squeeze activation — loose tolerance.
    out_bf16 = jax.block_until_ready(
        fire_forward(x, w_sq, b_sq, w_e1, b_e1, w_e3, b_e3))
    q = lambda a: a.astype(jnp.bfloat16).astype(jnp.float32)
    ref_q = fire_reference(q(x), q(w_sq), q(b_sq), q(w_e1), b_e1, q(w_e3), b_e3)
    assert out_bf16.shape == (N, Ce1 + Ce3, H, W), out_bf16.shape
    assert bool(jnp.allclose(out_bf16, ref_q, atol=5e-2, rtol=5e-2)), \
        float(jnp.max(jnp.abs(out_bf16 - ref_q)))

    print("KERNEL_OK")
</pallas_src>

<mosaic_0001>
module attributes {stable_mosaic.version = 11 : i64} {
  func.func @_fire_kernel(%arg0: i32, %arg1: i32, %arg2: memref<1x328x5xf32, #tpu.memory_space<vmem>>, %arg3: memref<5x8xf32, #tpu.memory_space<vmem>>, %arg4: memref<72x32xf32, #tpu.memory_space<vmem>>, %arg5: memref<1x32xf32, #tpu.memory_space<vmem>>, %arg6: memref<1x144x32xf32, #tpu.memory_space<vmem>>, %arg7: memref<184x8xf32, #tpu.memory_space<vmem>>, %arg8: memref<144x72xf32, #tpu.memory_space<vmem>>) attributes {dimension_semantics = [#tpu.dimension_semantics<parallel>, #tpu.dimension_semantics<parallel>], iteration_bounds = array<i64: 2, 2>, scalar_prefetch = 0 : i64, scratch_operands = 2 : i64, tpu.core_type = #tpu.core_type<tc>, window_params = [{transform_indices = @transform_0, window_bounds = array<i64: 1, 328, 5>}, {pipeline_mode = #tpu.pipeline_mode<synchronous>, transform_indices = @transform_1, window_bounds = array<i64: 5, 8>}, {pipeline_mode = #tpu.pipeline_mode<synchronous>, transform_indices = @transform_2, window_bounds = array<i64: 72, 32>}, {pipeline_mode = #tpu.pipeline_mode<synchronous>, transform_indices = @transform_3, window_bounds = array<i64: 1, 32>}, {transform_indices = @transform_4, window_bounds = array<i64: 1, 144, 32>}]} {
    %c144_i32 = arith.constant 144 : i32
    %0 = arith.muli %arg1, %c144_i32 : i32
    %1 = tpu.assume_multiple %0, 8 : i32
    %c0 = arith.constant 0 : index
    %2 = arith.index_cast %1 : i32 to index
    %c0_0 = arith.constant 0 : index
    %3 = vector.load %arg2[%c0, %2, %c0_0] : memref<1x328x5xf32, #tpu.memory_space<vmem>>, vector<1x184x5xf32>
    %4 = vector.shape_cast %3 : vector<1x184x5xf32> to vector<184x5xf32>
    %c0_1 = arith.constant 0 : index
    %c0_2 = arith.constant 0 : index
    %5 = vector.load %arg3[%c0_1, %c0_2] : memref<5x8xf32, #tpu.memory_space<vmem>>, vector<5x8xf32>
    %cst = arith.constant dense<0.000000e+00> : vector<184x8xf32>
    %6 = tpu.matmul %4, %5, %cst {dimension_numbers = #tpu.dot_dimension_numbers<[1], [0], [0], [1], [0, 0, 1, 1], [], []>} : vector<184x5xf32>, vector<5x8xf32>, vector<184x8xf32> -> vector<184x8xf32>
    %cst_3 = arith.constant 0.000000e+00 : f32
    %7 = vector.broadcast %cst_3 : f32 to vector<184x8xf32>
    %8 = arith.maximumf %6, %7 : vector<184x8xf32>
    %c0_4 = arith.constant 0 : index
    %c0_5 = arith.constant 0 : index
    %9 = vector.load %arg7[%c0_4, %c0_5] : memref<184x8xf32, #tpu.memory_space<vmem>>, vector<184x8xf32>
    tpu.vector_store %arg7[%c0_4, %c0_5], %8 {strides = array<i32>} : memref<184x8xf32, #tpu.memory_space<vmem>>, vector<184x8xf32>,
    %c0_6 = arith.constant 0 : index
    %c0_7 = arith.constant 0 : index
    %10 = vector.load %arg7[%c0_6, %c0_7] : memref<184x8xf32, #tpu.memory_space<vmem>>, vector<144x8xf32>
    %c0_8 = arith.constant 0 : index
    %c0_9 = arith.constant 0 : index
    %11 = vector.load %arg8[%c0_8, %c0_9] : memref<144x72xf32, #tpu.memory_space<vmem>>, vector<144x8xf32>
    tpu.vector_store %arg8[%c0_8, %c0_9], %10 {strides = array<i32>} : memref<144x72xf32, #tpu.memory_space<vmem>>, vector<144x8xf32>,
    %c1 = arith.constant 1 : index
    %c0_10 = arith.constant 0 : index
    %12 = vector.load %arg7[%c1, %c0_10] : memref<184x8xf32, #tpu.memory_space<vmem>>, vector<144x8xf32>
    %c0_11 = arith.constant 0 : index
    %c8 = arith.constant 8 : index
    %13 = vector.load %arg8[%c0_11, %c8] : memref<144x72xf32, #tpu.memory_space<vmem>>, vector<144x8xf32>
    tpu.vector_store %arg8[%c0_11, %c8], %12 {strides = array<i32>} : memref<144x72xf32, #tpu.memory_space<vmem>>, vector<144x8xf32>,
    %c2 = arith.constant 2 : index
    %c0_12 = arith.constant 0 : index
    %14 = vector.load %arg7[%c2, %c0_12] : memref<184x8xf32, #tpu.memory_space<vmem>>, vector<144x8xf32>
    %c0_13 = arith.constant 0 : index
    %c16 = arith.constant 16 : index
    %15 = vector.load %arg8[%c0_13, %c16] : memref<144x72xf32, #tpu.memory_space<vmem>>, vector<144x8xf32>
    tpu.vector_store %arg8[%c0_13, %c16], %14 {strides = array<i32>} : memref<144x72xf32, #tpu.memory_space<vmem>>, vector<144x8xf32>,
    %c18 = arith.constant 18 : index
    %c0_14 = arith.constant 0 : index
    %16 = vector.load %arg7[%c18, %c0_14] : memref<184x8xf32, #tpu.memory_space<vmem>>, vector<144x8xf32>
    %c0_15 = arith.constant 0 : index
    %c24 = arith.constant 24 : index
    %17 = vector.load %arg8[%c0_15, %c24] : memref<144x72xf32, #tpu.memory_space<vmem>>, vector<144x8xf32>
    tpu.vector_store %arg8[%c0_15, %c24], %16 {strides = array<i32>} : memref<144x72xf32, #tpu.memory_space<vmem>>, vector<144x8xf32>,
    %c19 = arith.constant 19 : index
    %c0_16 = arith.constant 0 : index
    %18 = vector.load %arg7[%c19, %c0_16] : memref<184x8xf32, #tpu.memory_space<vmem>>, vector<144x8xf32>
    %c0_17 = arith.constant 0 : index
    %c32 = arith.constant 32 : index
    %19 = vector.load %arg8[%c0_17, %c32] : memref<144x72xf32, #tpu.memory_space<vmem>>, vector<144x8xf32>
    tpu.vector_store %arg8[%c0_17, %c32], %18 {strides = array<i32>} : memref<144x72xf32, #tpu.memory_space<vmem>>, vector<144x8xf32>,
    %c20 = arith.constant 20 : index
    %c0_18 = arith.constant 0 : index
    %20 = vector.load %arg7[%c20, %c0_18] : memref<184x8xf32, #tpu.memory_space<vmem>>, vector<144x8xf32>
    %c0_19 = arith.constant 0 : index
    %c40 = arith.constant 40 : index
    %21 = vector.load %arg8[%c0_19, %c40] : memref<144x72xf32, #tpu.memory_space<vmem>>, vector<144x8xf32>
    tpu.vector_store %arg8[%c0_19, %c40], %20 {strides = array<i32>} : memref<144x72xf32, #tpu.memory_space<vmem>>, vector<144x8xf32>,
    %c36 = arith.constant 36 : index
    %c0_20 = arith.constant 0 : index
    %22 = vector.load %arg7[%c36, %c0_20] : memref<184x8xf32, #tpu.memory_space<vmem>>, vector<144x8xf32>
    %c0_21 = arith.constant 0 : index
    %c48 = arith.constant 48 : index
    %23 = vector.load %arg8[%c0_21, %c48] : memref<144x72xf32, #tpu.memory_space<vmem>>, vector<144x8xf32>
    tpu.vector_store %arg8[%c0_21, %c48], %22 {strides = array<i32>} : memref<144x72xf32, #tpu.memory_space<vmem>>, vector<144x8xf32>,
    %c37 = arith.constant 37 : index
    %c0_22 = arith.constant 0 : index
    %24 = vector.load %arg7[%c37, %c0_22] : memref<184x8xf32, #tpu.memory_space<vmem>>, vector<144x8xf32>
    %c0_23 = arith.constant 0 : index
    %c56 = arith.constant 56 : index
    %25 = vector.load %arg8[%c0_23, %c56] : memref<144x72xf32, #tpu.memory_space<vmem>>, vector<144x8xf32>
    tpu.vector_store %arg8[%c0_23, %c56], %24 {strides = array<i32>} : memref<144x72xf32, #tpu.memory_space<vmem>>, vector<144x8xf32>,
    %c38 = arith.constant 38 : index
    %c0_24 = arith.constant 0 : index
    %26 = vector.load %arg7[%c38, %c0_24] : memref<184x8xf32, #tpu.memory_space<vmem>>, vector<144x8xf32>
    %c0_25 = arith.constant 0 : index
    %c64 = arith.constant 64 : index
    %27 = vector.load %arg8[%c0_25, %c64] : memref<144x72xf32, #tpu.memory_space<vmem>>, vector<144x8xf32>
    tpu.vector_store %arg8[%c0_25, %c64], %26 {strides = array<i32>} : memref<144x72xf32, #tpu.memory_space<vmem>>, vector<144x8xf32>,
    %c0_26 = arith.constant 0 : index
    %c0_27 = arith.constant 0 : index
    %28 = vector.load %arg8[%c0_26, %c0_27] : memref<144x72xf32, #tpu.memory_space<vmem>>, vector<144x72xf32>
    %c0_28 = arith.constant 0 : index
    %c0_29 = arith.constant 0 : index
    %29 = vector.load %arg4[%c0_28, %c0_29] : memref<72x32xf32, #tpu.memory_space<vmem>>, vector<72x32xf32>
    %cst_30 = arith.constant dense<0.000000e+00> : vector<144x32xf32>
    %30 = tpu.matmul %28, %29, %cst_30 {dimension_numbers = #tpu.dot_dimension_numbers<[1], [0], [0], [1], [0, 0, 1, 1], [], []>} : vector<144x72xf32>, vector<72x32xf32>, vector<144x32xf32> -> vector<144x32xf32>
    %c0_31 = arith.constant 0 : index
    %c0_32 = arith.constant 0 : index
    %31 = vector.load %arg5[%c0_31, %c0_32] : memref<1x32xf32, #tpu.memory_space<vmem>>, vector<1x32xf32>
    %32 = vector.broadcast %31 : vector<1x32xf32> to vector<144x32xf32>
    %33 = arith.addf %30, %32 : vector<144x32xf32>
    %cst_33 = arith.constant 0.000000e+00 : f32
    %34 = vector.broadcast %cst_33 : f32 to vector<144x32xf32>
    %35 = arith.maximumf %33, %34 : vector<144x32xf32>
    %c0_34 = arith.constant 0 : index
    %c0_35 = arith.constant 0 : index
    %c0_36 = arith.constant 0 : index
    %36 = vector.load %arg6[%c0_34, %c0_35, %c0_36] : memref<1x144x32xf32, #tpu.memory_space<vmem>>, vector<1x144x32xf32>
    %37 = vector.shape_cast %36 : vector<1x144x32xf32> to vector<144x32xf32>
    %38 = vector.shape_cast %35 : vector<144x32xf32> to vector<1x144x32xf32>
    tpu.vector_store %arg6[%c0_34, %c0_35, %c0_36], %38 {strides = array<i32>} : memref<1x144x32xf32, #tpu.memory_space<vmem>>, vector<1x144x32xf32>,
    return
  }
  func.func @transform_0(%arg0: i32, %arg1: i32) -> (i32, i32, i32) {
    %c0_i32 = arith.constant 0 : i32
    %c0_i32_0 = arith.constant 0 : i32
    %c0_i32_1 = arith.constant 0 : i32
    return %arg0, %c0_i32, %c0_i32_0 : i32, i32, i32
  }
  func.func @transform_1(%arg0: i32, %arg1: i32) -> (i32, i32) {
    %c0_i32 = arith.constant 0 : i32
    %c0_i32_0 = arith.constant 0 : i32
    %c0_i32_1 = arith.constant 0 : i32
    return %c0_i32, %c0_i32_0 : i32, i32
  }
  func.func @transform_2(%arg0: i32, %arg1: i32) -> (i32, i32) {
    %c0_i32 = arith.constant 0 : i32
    %c0_i32_0 = arith.constant 0 : i32
    %c0_i32_1 = arith.constant 0 : i32
    return %c0_i32, %c0_i32_0 : i32, i32
  }
  func.func @transform_3(%arg0: i32, %arg1: i32) -> (i32, i32) {
    %c0_i32 = arith.constant 0 : i32
    %c0_i32_0 = arith.constant 0 : i32
    %c0_i32_1 = arith.constant 0 : i32
    return %c0_i32, %c0_i32_0 : i32, i32
  }
  func.func @transform_4(%arg0: i32, %arg1: i32) -> (i32, i32, i32) {
    %c0_i32 = arith.constant 0 : i32
    %c0_i32_0 = arith.constant 0 : i32
    return %arg0, %arg1, %c0_i32 : i32, i32, i32
  }
}

</mosaic_0001>

<llo_original>
// kernel: tpu_custom_call.1
$region0: #{tpu_custom_call.1}
  #allocation0 [shape = 'u32[]', space=smem, size = 0x4, offset = 0x4, fixed_abs, tag = 'smem constant byte address 0x4 - core index']
  #allocation1 [shape = 'u32[144,128]{1,0:T(1,128)}', space=vmem, size = 0x12000, scoped, tag = 'internal scratch']
  #allocation2 [shape = 'f32[184,8]{1,0:T(8,128)}', space=vmem, size = 0x17000, scoped, tag = 'scratch operand']
  #allocation3 [shape = 'f32[144,72]{1,0:T(8,128)}', space=vmem, size = 0x12000, scoped, tag = 'scratch operand']
  %s0 = inlined_call_operand.vmem [shape: f32[2,328,5], index: 0, kind: input, shape index: {}]
  %s1 = inlined_call_operand.vmem [shape: f32[5,8], index: 1, kind: input, shape index: {}]
  %s2 = inlined_call_operand.vmem [shape: f32[72,32], index: 2, kind: input, shape index: {}]
  %s3 = inlined_call_operand.vmem [shape: f32[1,32], index: 3, kind: input, shape index: {}]
  %s4 = inlined_call_operand.vmem [shape: f32[2,288,32], index: 4, kind: output, shape index: {}]
  %s5 = sld [smem:[#allocation0]]
  $region49: #{tpu_custom_call.1} parent=0
    _
  %s7 = ssub.s32 1, %s5
  %s8 = scalar_select 0, %s7, %s5
  loop: start=0, step=1, limit=6
  $region2: #{tpu_custom_call.1} parent=0 // loop_pre_header
    _
  $region3: #{tpu_custom_call.1} parent=0 // loop_header
    %s10 = sphi 0, %s14
    %p11 = scmp.ge.s32.totalorder %s10, 6
    %s17 = sphi 0, %s29
    %s18 = sphi 0, %s25
    %s19 = sphi 0, %s17
    %s20 = sphi 0, %s18
    %s21 = sphi 0, %s19
    %s22 = sphi 0, %s20
    %s32 = sphi 0, %s34
    %s35 = sphi 0, %s32
    %s36 = sphi 0, %s35
    %s52 = sphi 0, %s36
    %s56 = sphi 0, %s56
    %s58 = sphi 0, %s56
    %s59 = sphi 0, %s58
    %s73 = sphi 0, %s59
    %s77 = sphi 0, %s77
    %s79 = sphi 0, %s77
    %s80 = sphi 0, %s79
    %s94 = sphi 0, %s80
    %s98 = sphi 0, %s98
    %s100 = sphi 0, %s98
    %s101 = sphi 0, %s100
    %s115 = sphi 0, %s101
    %s123 = sphi 0, %s125
    %s126 = sphi 0, %s123
    %s127 = sphi 0, %s126
    %s143 = sphi 0, %s127
  $region4: #{tpu_custom_call.1} parent=0 // loop_header_branch
    %13 = sbr.rel (%p11) target = $region8
  $region5: #{tpu_custom_call.1} parent=0 // loop_body
    %s15 = ssub.s32 %s10, 1
    %s16 = ssub.s32 %s10, 2
    %s23 = sadd.s32 1, %s18
    %p24 = scmp.ge.s32.totalorder %s23, 2
    %s25 = scalar_select %p24, 0, %s23
    %s26 = sadd.s32 1, %s17
    %s27 = scalar_select %p24, %s26, %s17
    %p28 = scmp.ge.s32.totalorder %s27, 2
    %s29 = scalar_select %p28, 0, %s27
    %s30 = ssub.s32 %s17, %s29
    %p31 = scmp.eq.s32.totalorder %s30, 0
    %s33 = sadd.s32 %s32, 1
    %s34 = scalar_select %p31, %s32, %s33
    %p37 = pneg %p31
    %p38 = scmp.eq.s32.totalorder %s10, 3
    %p39 = por %p37, %p38
    %p40 = scmp.ne.s32.totalorder %s32, %s35
    %p41 = scmp.eq.s32.totalorder %s10, 0
    %p42 = por %p40, %p41
    %p43 = scmp.ne.s32.totalorder %s32, %s35
    %p44 = scmp.eq.s32.totalorder %s15, 3
    %p45 = por %p43, %p44
    %p46 = scmp.ne.s32.totalorder %s35, %s36
    %p47 = scmp.eq.s32.totalorder %s15, 0
    %p48 = por %p46, %p47
    %p49 = scmp.ne.s32.totalorder %s35, %s36
    %p50 = scmp.eq.s32.totalorder %s16, 3
    %p51 = por %p49, %p50
    %p53 = scmp.ne.s32.totalorder %s36, %s52
    %p54 = scmp.eq.s32.totalorder %s16, 0
    %p55 = por %p53, %p54
    %s57 = sadd.s32 %s56, 1
    %p60 = scmp.eq.s32.totalorder %s10, 3
    %p61 = scmp.ne.s32.totalorder %s56, %s58
    %p62 = scmp.eq.s32.totalorder %s10, 0
    %p63 = por %p61, %p62
    %p64 = scmp.ne.s32.totalorder %s56, %s58
    %p65 = scmp.eq.s32.totalorder %s15, 3
    %p66 = por %p64, %p65
    %p67 = scmp.ne.s32.totalorder %s58, %s59
    %p68 = scmp.eq.s32.totalorder %s15, 0
    %p69 = por %p67, %p68
    %p70 = scmp.ne.s32.totalorder %s58, %s59
    %p71 = scmp.eq.s32.totalorder %s16, 3
    %p72 = por %p70, %p71
    %p74 = scmp.ne.s32.totalorder %s59, %s73
    %p75 = scmp.eq.s32.totalorder %s16, 0
    %p76 = por %p74, %p75
    %s78 = sadd.s32 %s77, 1
    %p81 = scmp.eq.s32.totalorder %s10, 3
    %p82 = scmp.ne.s32.totalorder %s77, %s79
    %p83 = scmp.eq.s32.totalorder %s10, 0
    %p84 = por %p82, %p83
    %p85 = scmp.ne.s32.totalorder %s77, %s79
    %p86 = scmp.eq.s32.totalorder %s15, 3
    %p87 = por %p85, %p86
    %p88 = scmp.ne.s32.totalorder %s79, %s80
    %p89 = scmp.eq.s32.totalorder %s15, 0
    %p90 = por %p88, %p89
    %p91 = scmp.ne.s32.totalorder %s79, %s80
    %p92 = scmp.eq.s32.totalorder %s16, 3
    %p93 = por %p91, %p92
    %p95 = scmp.ne.s32.totalorder %s80, %s94
    %p96 = scmp.eq.s32.totalorder %s16, 0
    %p97 = por %p95, %p96
    %s99 = sadd.s32 %s98, 1
    %p102 = scmp.eq.s32.totalorder %s10, 3
    %p103 = scmp.ne.s32.totalorder %s98, %s100
    %p104 = scmp.eq.s32.totalorder %s10, 0
    %p105 = por %p103, %p104
    %p106 = scmp.ne.s32.totalorder %s98, %s100
    %p107 = scmp.eq.s32.totalorder %s15, 3
    %p108 = por %p106, %p107
    %p109 = scmp.ne.s32.totalorder %s100, %s101
    %p110 = scmp.eq.s32.totalorder %s15, 0
    %p111 = por %p109, %p110
    %p112 = scmp.ne.s32.totalorder %s100, %s101
    %p113 = scmp.eq.s32.totalorder %s16, 3
    %p114 = por %p112, %p113
    %p116 = scmp.ne.s32.totalorder %s101, %s115
    %p117 = scmp.eq.s32.totalorder %s16, 0
    %p118 = por %p116, %p117
    %s119 = ssub.s32 %s17, %s29
    %s120 = ssub.s32 %s18, %s25
    %s121 = sor.u32 %s119, %s120
    %p122 = scmp.eq.s32.totalorder %s121, 0
    %s124 = sadd.s32 %s123, 1
    %s125 = scalar_select %p122, %s123, %s124
    %p128 = pneg %p122
    %p129 = scmp.eq.s32.totalorder %s10, 3
    %p130 = por %p128, %p129
    %p131 = scmp.ne.s32.totalorder %s123, %s126
    %p132 = scmp.eq.s32.totalorder %s10, 0
    %p133 = por %p131, %p132
    %p134 = scmp.ne.s32.totalorder %s123, %s126
    %p135 = scmp.eq.s32.totalorder %s15, 3
    %p136 = por %p134, %p135
    %p137 = scmp.ne.s32.totalorder %s126, %s127
    %p138 = scmp.eq.s32.totalorder %s15, 0
    %p139 = por %p137, %p138
    %p140 = scmp.ne.s32.totalorder %s126, %s127
    %p141 = scmp.eq.s32.totalorder %s16, 3
    %p142 = por %p140, %p141
    %p144 = scmp.ne.s32.totalorder %s127, %s143
    %p145 = scmp.eq.s32.totalorder %s16, 0
    %p146 = por %p144, %p145
    %p147 = scmp.le.s32.totalorder 1, %s10
    %p148 = scmp.lt.s32.totalorder %s10, 5
    %p149 = pnand %p147, %p148
    %p150 = pneg %p149
    // Predicated region
    $region9: #{tpu_custom_call.1} parent=5 // pred_check
      _
    $region10: #{tpu_custom_call.1} parent=5 // pred_check_branch
      %152 = sbr.rel (%p149) target = $region12
    $region11: #{tpu_custom_call.1} parent=5 // pred_region
      %s153 = ssub.s32 %s10, 1
      // Predicated region
      $region13: #{tpu_custom_call.1} parent=11 // pred_check
        %p154 = pneg %p69
      $region14: #{tpu_custom_call.1} parent=11 // pred_check_branch
        %156 = sbr.rel (%p154) target = $region16
      $region15: #{tpu_custom_call.1} parent=11 // pred_region
        _
      $region16: #{tpu_custom_call.1} parent=11 // pred_fallthru
        _
      // Predicated region
      $region17: #{tpu_custom_call.1} parent=11 // pred_check
        %p157 = pneg %p90
      $region18: #{tpu_custom_call.1} parent=11 // pred_check_branch
        %159 = sbr.rel (%p157) target = $region20
      $region19: #{tpu_custom_call.1} parent=11 // pred_region
        _
      $region20: #{tpu_custom_call.1} parent=11 // pred_fallthru
        _
      // Predicated region
      $region21: #{tpu_custom_call.1} parent=11 // pred_check
        %p160 = pneg %p111
      $region22: #{tpu_custom_call.1} parent=11 // pred_check_branch
        %162 = sbr.rel (%p160) target = $region24
      $region23: #{tpu_custom_call.1} parent=11 // pred_region
        _
      $region24: #{tpu_custom_call.1} parent=11 // pred_fallthru
        _
    $region12: #{tpu_custom_call.1} parent=5 // pred_fallthru
      _
    %p163 = scmp.lt.s32.totalorder %s10, 4
    // Predicated region
    $region25: #{tpu_custom_call.1} parent=5 // pred_check
      %p164 = pneg %p163
    $region26: #{tpu_custom_call.1} parent=5 // pred_check_branch
      %166 = sbr.rel (%p164) target = $region28
    $region27: #{tpu_custom_call.1} parent=5 // pred_region
      // Predicated region
      $region29: #{tpu_custom_call.1} parent=27 // pred_check
        %p167 = pneg %p42
      $region30: #{tpu_custom_call.1} parent=27 // pred_check_branch
        %169 = sbr.rel (%p167) target = $region32
      $region31: #{tpu_custom_call.1} parent=27 // pred_region
        %p170 = scmp.lt.s32.totalorder %s17, 1
        %s171 = scalar_select %p170, %s17, 1
        %s172 = smul.addr %s171, 41
        %s173 = smul.addr %s172, 8
        %s174 = scalar_lea.vmem %s0, %s173
      $region32: #{tpu_custom_call.1} parent=27 // pred_fallthru
        _
    $region28: #{tpu_custom_call.1} parent=5 // pred_fallthru
      _
    %p175 = scmp.le.s32.totalorder 1, %s10
    %p176 = scmp.lt.s32.totalorder %s10, 5
    %p177 = pnand %p175, %p176
    %p178 = pneg %p177
    // Predicated region
    $region33: #{tpu_custom_call.1} parent=5 // pred_check
      _
    $region34: #{tpu_custom_call.1} parent=5 // pred_check_branch
      %180 = sbr.rel (%p177) target = $region36
    $region35: #{tpu_custom_call.1} parent=5 // pred_region
      %s181 = ssub.s32 %s10, 1
      %p182 = scmp.lt.s32.totalorder %s19, 1
      %s183 = scalar_select %p182, %s19, 1
      %s184 = smul.addr %s183, 41
      %s185 = smul.addr %s184, 8
      %s186 = scalar_lea.vmem %s0, %s185
      %p187 = pneg %p48
      %p188 = pneg %p45
      %p189 = pneg %p69
      %p190 = pneg %p66
      %p191 = pneg %p90
      %p192 = pneg %p87
      %p193 = pneg %p111
      %p194 = pneg %p108
      %p195 = pneg %p139
      %p196 = pneg %p136
      %s197 = smul.u32 18, %s20
      %p198 = scmp.lt.s32.totalorder %s19, 1
      %s199 = scalar_select %p198, %s19, 1
      %p200 = scmp.lt.s32.totalorder %s197, 35
      %s201 = scalar_select %p200, %s197, 35
      %s202 = smul.addr %s199, 36
      %s203 = sadd.s32 %s201, %s202
      %s204 = smul.addr %s203, 8
      %s205 = scalar_lea.vmem %s4, %s204
      %p206 = scmp.lt.s32.totalorder %s19, 1
      %s207 = scalar_select %p206, %s19, 1
      %s208 = smul.addr %s207, 41
      %s209 = smul.addr %s208, 8
      %s210 = scalar_lea.vmem %s0, %s209
      %s211 = smul.u32 18, %s20
      %p212 = scmp.lt.s32.totalorder %s19, 1
      %s213 = scalar_select %p212, %s19, 1
      %p214 = scmp.lt.s32.totalorder %s211, 35
      %s215 = scalar_select %p214, %s211, 35
      %s216 = smul.addr %s213, 36
      %s217 = sadd.s32 %s215, %s216
      %s218 = smul.addr %s217, 8
      %s219 = scalar_lea.vmem %s4, %s218
      %s220 = smul.u32 18, %s20
      %s221 = smul.u32 %s20, 144
      %s222 = scalar_lea.vmem %s210, %s221
      %v223 = vld [vmem:[%s222] sm:$0xff]
      %v224 = vld [vmem:[%s222 + $0x8] sm:$0xff]
      %v225 = vld [vmem:[%s222 + $0x10] sm:$0xff]
      %v226 = vld [vmem:[%s222 + $0x18] sm:$0xff]
      %v227 = vld [vmem:[%s222 + $0x20] sm:$0xff]
      %v228 = vld [vmem:[%s222 + $0x28] sm:$0xff]
      %v229 = vld [vmem:[%s222 + $0x30] sm:$0xff]
      %v230 = vld [vmem:[%s222 + $0x38] sm:$0xff]
      %v231 = vld [vmem:[%s222 + $0x40] sm:$0xff]
      %v232 = vld [vmem:[%s222 + $0x48] sm:$0xff]
      %v233 = vld [vmem:[%s222 + $0x50] sm:$0xff]
      %v234 = vld [vmem:[%s222 + $0x58] sm:$0xff]
      %v235 = vld [vmem:[%s222 + $0x60] sm:$0xff]
      %v236 = vld [vmem:[%s222 + $0x68] sm:$0xff]
      %v237 = vld [vmem:[%s222 + $0x70] sm:$0xff]
      %v238 = vld [vmem:[%s222 + $0x78] sm:$0xff]
      %v239 = vld [vmem:[%s222 + $0x80] sm:$0xff]
      %v240 = vld [vmem:[%s222 + $0x88] sm:$0xff]
      %v241 = vld [vmem:[%s222 + $0x90] sm:$0xff]
      %v242 = vld [vmem:[%s222 + $0x98] sm:$0xff]
      %v243 = vld [vmem:[%s222 + $0xa0] sm:$0xff]
      %v244 = vld [vmem:[%s222 + $0xa8] sm:$0xff]
      %v245 = vld [vmem:[%s222 + $0xb0] sm:$0xff]
      %v246 = vld [vmem:[%s1] sm:$0x1f]
      %vm247 = vcmask 39936
      %v249 = vsel %vm247, %v223, 0
      %v252 = vsel %vm247, %v224, 0
      %v255 = vsel %vm247, %v225, 0
      %v258 = vsel %vm247, %v226, 0
      %v261 = vsel %vm247, %v227, 0
      %v264 = vsel %vm247, %v228, 0
      %v267 = vsel %vm247, %v229, 0
      %v270 = vsel %vm247, %v230, 0
      %v273 = vsel %vm247, %v231, 0
      %v276 = vsel %vm247, %v232, 0
      %v279 = vsel %vm247, %v233, 0
      %v282 = vsel %vm247, %v234, 0
      %v285 = vsel %vm247, %v235, 0
      %v288 = vsel %vm247, %v236, 0
      %v291 = vsel %vm247, %v237, 0
      %v294 = vsel %vm247, %v238, 0
      %v297 = vsel %vm247, %v239, 0
      %v300 = vsel %vm247, %v240, 0
      %v303 = vsel %vm247, %v241, 0
      %v306 = vsel %vm247, %v242, 0
      %v309 = vsel %vm247, %v243, 0
      %v312 = vsel %vm247, %v244, 0
      %v315 = vsel %vm247, %v245, 0
      %vm317 = vcmask 1044480
      %v319 = vsel %vm317, %v246, 0
      %321 = vmatprep.subr.mxu0 0.0
      %322 = vmatpush1.msra.mxu0 %v319
      %323 = vmatprep.subr.mxu0 0.0
      %324 = vmatpush1.msra.mxu0 0.0
      %325 = vmatprep.subr.mxu0 0.0
      %326 = vmatpush1.msra.mxu0 0.0
      %327 = vmatprep.subr.mxu0 0.0
      %328 = vmatpush1.msra.mxu0 0.0
      %329 = vmatprep.subr.mxu0 0.0
      %330 = vmatpush1.msra.mxu0 0.0
      %331 = vmatprep.subr.mxu0 0.0
      %332 = vmatpush1.msra.mxu0 0.0
      %333 = vmatprep.subr.mxu0 0.0
      %334 = vmatpush1.msra.mxu0 0.0
      %335 = vmatprep.subr.mxu0 0.0
      %336 = vmatpush1.msra.mxu0 0.0
      %337 = vmatprep.subr.mxu0 0.0
      %338 = vmatpush1.msra.mxu0 0.0
      %339 = vmatprep.subr.mxu0 0.0
      %340 = vmatpush1.msra.mxu0 0.0
      %341 = vmatprep.subr.mxu0 0.0
      %342 = vmatpush1.msra.mxu0 0.0
      %343 = vmatprep.subr.mxu0 0.0
      %344 = vmatpush1.msra.mxu0 0.0
      %345 = vmatprep.subr.mxu0 0.0
      %346 = vmatpush1.msra.mxu0 0.0
      %347 = vmatprep.subr.mxu0 0.0
      %348 = vmatpush1.msra.mxu0 0.0
      %349 = vmatprep.subr.mxu0 0.0
      %350 = vmatpush1.msra.mxu0 0.0
      %351 = vmatprep.subr.mxu0 0.0
      %352 = vmatpush1.msra.mxu0 0.0
      %353 = vmatprep.subr.mxu0 0.0
      %354 = vmatpush1.msra.mxu0 0.0
      %355 = vmatprep.subr.mxu0 0.0
      %356 = vmatpush1.msra.mxu0 0.0
      %357 = vmatprep.subr.mxu0 0.0
      %358 = vmatpush1.msra.mxu0 0.0
      %359 = vmatprep.subr.mxu0 0.0
      %360 = vmatpush1.msra.mxu0 0.0
      %361 = vmatprep.subr.mxu0 0.0
      %362 = vmatpush1.msra.mxu0 0.0
      %363 = vmatprep.subr.mxu0 0.0
      %364 = vmatpush1.msra.mxu0 0.0
      %365 = vmatprep.subr.mxu0 0.0
      %366 = vmatpush1.msra.mxu0 0.0
      %367 = vmatprep.subr.mxu0 0.0
      %368 = vmatpush1.msra.mxu0 0.0
      %369 = vmatprep.subr.mxu0 0.0
      %370 = vmatpush1.msra.mxu0 0.0
      %371 = vmatprep.subr.mxu0 0.0
      %372 = vmatpush1.msra.mxu0 0.0
      %373 = vmatprep.subr.mxu0 0.0
      %374 = vmatpush1.msra.mxu0 0.0
      %375 = vmatprep.subr.mxu0 0.0
      %376 = vmatpush1.msra.mxu0 0.0
      %377 = vmatprep.subr.mxu0 0.0
      %378 = vmatpush1.msra.mxu0 0.0
      %379 = vmatprep.subr.mxu0 0.0
      %380 = vmatpush1.msra.mxu0 0.0
      %381 = vmatprep.subr.mxu0 0.0
      %382 = vmatpush1.msra.mxu0 0.0
      %383 = vmatprep.subr.mxu0 0.0
      %384 = vmatpush1.msra.mxu0 0.0
      %385 = vmatprep.mubr.f32.mxu0 0.0
      %386 = vmatmul.mubr.f32.gmra.mrb[0].mxu0 %v249
      %v387 = vpop.f32.mrb[0].mxu0
      %v388 = vadd.f32 0.0, %v387
      %v389 = vpop.f32.mrb[0].mxu0
      %390 = vmatprep.mubr.f32.mxu0 0.0
      %391 = vmatmul.mubr.f32.gmra.mrb[0].mxu0 %v252
      %v392 = vpop.f32.mrb[0].mxu0
      %v393 = vadd.f32 0.0, %v392
      %v394 = vpop.f32.mrb[0].mxu0
      %395 = vmatprep.mubr.f32.mxu0 0.0
      %396 = vmatmul.mubr.f32.gmra.mrb[0].mxu0 %v255
      %v397 = vpop.f32.mrb[0].mxu0
      %v398 = vadd.f32 0.0, %v397
      %v399 = vpop.f32.mrb[0].mxu0
      %400 = vmatprep.mubr.f32.mxu0 0.0
      %401 = vmatmul.mubr.f32.gmra.mrb[0].mxu0 %v258
      %v402 = vpop.f32.mrb[0].mxu0
      %v403 = vadd.f32 0.0, %v402
      %v404 = vpop.f32.mrb[0].mxu0
      %405 = vmatprep.mubr.f32.mxu0 0.0
      %406 = vmatmul.mubr.f32.gmra.mrb[0].mxu0 %v261
      %v407 = vpop.f32.mrb[0].mxu0
      %v408 = vadd.f32 0.0, %v407
      %v409 = vpop.f32.mrb[0].mxu0
      %410 = vmatprep.mubr.f32.mxu0 0.0
      %411 = vmatmul.mubr.f32.gmra.mrb[0].mxu0 %v264
      %v412 = vpop.f32.mrb[0].mxu0
      %v413 = vadd.f32 0.0, %v412
      %v414 = vpop.f32.mrb[0].mxu0
      %415 = vmatprep.mubr.f32.mxu0 0.0
      %416 = vmatmul.mubr.f32.gmra.mrb[0].mxu0 %v267
      %v417 = vpop.f32.mrb[0].mxu0
      %v418 = vadd.f32 0.0, %v417
      %v419 = vpop.f32.mrb[0].mxu0
      %420 = vmatprep.mubr.f32.mxu0 0.0
      %421 = vmatmul.mubr.f32.gmra.mrb[0].mxu0 %v270
      %v422 = vpop.f32.mrb[0].mxu0
      %v423 = vadd.f32 0.0, %v422
      %v424 = vpop.f32.mrb[0].mxu0
      %425 = vmatprep.mubr.f32.mxu0 0.0
      %426 = vmatmul.mubr.f32.gmra.mrb[0].mxu0 %v273
      %v427 = vpop.f32.mrb[0].mxu0
      %v428 = vadd.f32 0.0, %v427
      %v429 = vpop.f32.mrb[0].mxu0
      %430 = vmatprep.mubr.f32.mxu0 0.0
      %431 = vmatmul.mubr.f32.gmra.mrb[0].mxu0 %v276
      %v432 = vpop.f32.mrb[0].mxu0
      %v433 = vadd.f32 0.0, %v432
      %v434 = vpop.f32.mrb[0].mxu0
      %435 = vmatprep.mubr.f32.mxu0 0.0
      %436 = vmatmul.mubr.f32.gmra.mrb[0].mxu0 %v279
      %v437 = vpop.f32.mrb[0].mxu0
      %v438 = vadd.f32 0.0, %v437
      %v439 = vpop.f32.mrb[0].mxu0
      %440 = vmatprep.mubr.f32.mxu0 0.0
      %441 = vmatmul.mubr.f32.gmra.mrb[0].mxu0 %v282
      %v442 = vpop.f32.mrb[0].mxu0
      %v443 = vadd.f32 0.0, %v442
      %v444 = vpop.f32.mrb[0].mxu0
      %445 = vmatprep.mubr.f32.mxu0 0.0
      %446 = vmatmul.mubr.f32.gmra.mrb[0].mxu0 %v285
      %v447 = vpop.f32.mrb[0].mxu0
      %v448 = vadd.f32 0.0, %v447
      %v449 = vpop.f32.mrb[0].mxu0
      %450 = vmatprep.mubr.f32.mxu0 0.0
      %451 = vmatmul.mubr.f32.gmra.mrb[0].mxu0 %v288
      %v452 = vpop.f32.mrb[0].mxu0
      %v453 = vadd.f32 0.0, %v452
      %v454 = vpop.f32.mrb[0].mxu0
      %455 = vmatprep.mubr.f32.mxu0 0.0
      %456 = vmatmul.mubr.f32.gmra.mrb[0].mxu0 %v291
      %v457 = vpop.f32.mrb[0].mxu0
      %v458 = vadd.f32 0.0, %v457
      %v459 = vpop.f32.mrb[0].mxu0
      %460 = vmatprep.mubr.f32.mxu0 0.0
      %461 = vmatmul.mubr.f32.gmra.mrb[0].mxu0 %v294
      %v462 = vpop.f32.mrb[0].mxu0
      %v463 = vadd.f32 0.0, %v462
      %v464 = vpop.f32.mrb[0].mxu0
      %465 = vmatprep.mubr.f32.mxu0 0.0
      %466 = vmatmul.mubr.f32.gmra.mrb[0].mxu0 %v297
      %v467 = vpop.f32.mrb[0].mxu0
      %v468 = vadd.f32 0.0, %v467
      %v469 = vpop.f32.mrb[0].mxu0
      %470 = vmatprep.mubr.f32.mxu0 0.0
      %471 = vmatmul.mubr.f32.gmra.mrb[0].mxu0 %v300
      %v472 = vpop.f32.mrb[0].mxu0
      %v473 = vadd.f32 0.0, %v472
      %v474 = vpop.f32.mrb[0].mxu0
      %475 = vmatprep.mubr.f32.mxu0 0.0
      %476 = vmatmul.mubr.f32.gmra.mrb[0].mxu0 %v303
      %v477 = vpop.f32.mrb[0].mxu0
      %v478 = vadd.f32 0.0, %v477
      %v479 = vpop.f32.mrb[0].mxu0
      %480 = vmatprep.mubr.f32.mxu0 0.0
      %481 = vmatmul.mubr.f32.gmra.mrb[0].mxu0 %v306
      %v482 = vpop.f32.mrb[0].mxu0
      %v483 = vadd.f32 0.0, %v482
      %v484 = vpop.f32.mrb[0].mxu0
      %485 = vmatprep.mubr.f32.mxu0 0.0
      %486 = vmatmul.mubr.f32.gmra.mrb[0].mxu0 %v309
      %v487 = vpop.f32.mrb[0].mxu0
      %v488 = vadd.f32 0.0, %v487
      %v489 = vpop.f32.mrb[0].mxu0
      %490 = vmatprep.mubr.f32.mxu0 0.0
      %491 = vmatmul.mubr.f32.gmra.mrb[0].mxu0 %v312
      %v492 = vpop.f32.mrb[0].mxu0
      %v493 = vadd.f32 0.0, %v492
      %v494 = vpop.f32.mrb[0].mxu0
      %495 = vmatprep.mubr.f32.mxu0 0.0
      %496 = vmatmul.mubr.f32.gmra.mrb[0].mxu0 %v315
      %v497 = vpop.f32.mrb[0].mxu0
      %v498 = vadd.f32 0.0, %v497
      %v499 = vpop.f32.mrb[0].mxu0
      %500 = vdwg.mxu0
      %v501 = vmax.f32 %v388, 0.0
      %v502 = vmax.f32 %v393, 0.0
      %v503 = vmax.f32 %v398, 0.0
      %v504 = vmax.f32 %v403, 0.0
      %v505 = vmax.f32 %v408, 0.0
      %v506 = vmax.f32 %v413, 0.0
      %v507 = vmax.f32 %v418, 0.0
      %v508 = vmax.f32 %v423, 0.0
      %v509 = vmax.f32 %v428, 0.0
      %v510 = vmax.f32 %v433, 0.0
      %v511 = vmax.f32 %v438, 0.0
      %v512 = vmax.f32 %v443, 0.0
      %v513 = vmax.f32 %v448, 0.0
      %v514 = vmax.f32 %v453, 0.0
      %v515 = vmax.f32 %v458, 0.0
      %v516 = vmax.f32 %v463, 0.0
      %v517 = vmax.f32 %v468, 0.0
      %v518 = vmax.f32 %v473, 0.0
      %v519 = vmax.f32 %v478, 0.0
      %v520 = vmax.f32 %v483, 0.0
      %v521 = vmax.f32 %v488, 0.0
      %v522 = vmax.f32 %v493, 0.0
      %v523 = vmax.f32 %v498, 0.0
      %vm524 = vcmask 64512
      %525 = vst.msk [vmem:[#allocation2] sm:$0xff] %vm524, %v501
      %526 = vst.msk [vmem:[#allocation2 + $0x8] sm:$0xff] %vm524, %v502
      %527 = vst.msk [vmem:[#allocation2 + $0x10] sm:$0xff] %vm524, %v503
      %528 = vst.msk [vmem:[#allocation2 + $0x18] sm:$0xff] %vm524, %v504
      %529 = vst.msk [vmem:[#allocation2 + $0x20] sm:$0xff] %vm524, %v505
      %530 = vst.msk [vmem:[#allocation2 + $0x28] sm:$0xff] %vm524, %v506
      %531 = vst.msk [vmem:[#allocation2 + $0x30] sm:$0xff] %vm524, %v507
      %532 = vst.msk [vmem:[#allocation2 + $0x38] sm:$0xff] %vm524, %v508
      %533 = vst.msk [vmem:[#allocation2 + $0x40] sm:$0xff] %vm524, %v509
      %534 = vst.msk [vmem:[#allocation2 + $0x48] sm:$0xff] %vm524, %v510
      %535 = vst.msk [vmem:[#allocation2 + $0x50] sm:$0xff] %vm524, %v511
      %536 = vst.msk [vmem:[#allocation2 + $0x58] sm:$0xff] %vm524, %v512
      %537 = vst.msk [vmem:[#allocation2 + $0x60] sm:$0xff] %vm524, %v513
      %538 = vst.msk [vmem:[#allocation2 + $0x68] sm:$0xff] %vm524, %v514
      %539 = vst.msk [vmem:[#allocation2 + $0x70] sm:$0xff] %vm524, %v515
      %540 = vst.msk [vmem:[#allocation2 + $0x78] sm:$0xff] %vm524, %v516
      %541 = vst.msk [vmem:[#allocation2 + $0x80] sm:$0xff] %vm524, %v517
      %542 = vst.msk [vmem:[#allocation2 + $0x88] sm:$0xff] %vm524, %v518
      %543 = vst.msk [vmem:[#allocation2 + $0x90] sm:$0xff] %vm524, %v519
      %544 = vst.msk [vmem:[#allocation2 + $0x98] sm:$0xff] %vm524, %v520
      %545 = vst.msk [vmem:[#allocation2 + $0xa0] sm:$0xff] %vm524, %v521
      %546 = vst.msk [vmem:[#allocation2 + $0xa8] sm:$0xff] %vm524, %v522
      %547 = vst.msk [vmem:[#allocation2 + $0xb0] sm:$0xff] %vm524, %v523
      %v548 = vld [vmem:[#allocation2] sm:$0xff]
      %v549 = vld [vmem:[#allocation2 + $0x8] sm:$0xff]
      %v550 = vld [vmem:[#allocation2 + $0x10] sm:$0xff]
      %v551 = vld [vmem:[#allocation2 + $0x18] sm:$0xff]
      %v552 = vld [vmem:[#allocation2 + $0x20] sm:$0xff]
      %v553 = vld [vmem:[#allocation2 + $0x28] sm:$0xff]
      %v554 = vld [vmem:[#allocation2 + $0x30] sm:$0xff]
      %v555 = vld [vmem:[#allocation2 + $0x38] sm:$0xff]
      %v556 = vld [vmem:[#allocation2 + $0x40] sm:$0xff]
      %v557 = vld [vmem:[#allocation2 + $0x48] sm:$0xff]
      %v558 = vld [vmem:[#allocation2 + $0x50] sm:$0xff]
      %v559 = vld [vmem:[#allocation2 + $0x58] sm:$0xff]
      %v560 = vld [vmem:[#allocation2 + $0x60] sm:$0xff]
      %v561 = vld [vmem:[#allocation2 + $0x68] sm:$0xff]
      %v562 = vld [vmem:[#allocation2 + $0x70] sm:$0xff]
      %v563 = vld [vmem:[#allocation2 + $0x78] sm:$0xff]
      %v564 = vld [vmem:[#allocation2 + $0x80] sm:$0xff]
      %v565 = vld [vmem:[#allocation2 + $0x88] sm:$0xff]
      %566 = vst.msk [vmem:[#allocation3] sm:$0xff] %vm524, %v548
      %567 = vst.msk [vmem:[#allocation3 + $0x8] sm:$0xff] %vm524, %v549
      %568 = vst.msk [vmem:[#allocation3 + $0x10] sm:$0xff] %vm524, %v550
      %569 = vst.msk [vmem:[#allocation3 + $0x18] sm:$0xff] %vm524, %v551
      %570 = vst.msk [vmem:[#allocation3 + $0x20] sm:$0xff] %vm524, %v552
      %571 = vst.msk [vmem:[#allocation3 + $0x28] sm:$0xff] %vm524, %v553
      %572 = vst.msk [vmem:[#allocation3 + $0x30] sm:$0xff] %vm524, %v554
      %573 = vst.msk [vmem:[#allocation3 + $0x38] sm:$0xff] %vm524, %v555
      %574 = vst.msk [vmem:[#allocation3 + $0x40] sm:$0xff] %vm524, %v556
      %575 = vst.msk [vmem:[#allocation3 + $0x48] sm:$0xff] %vm524, %v557
      %576 = vst.msk [vmem:[#allocation3 + $0x50] sm:$0xff] %vm524, %v558
      %577 = vst.msk [vmem:[#allocation3 + $0x58] sm:$0xff] %vm524, %v559
      %578 = vst.msk [vmem:[#allocation3 + $0x60] sm:$0xff] %vm524, %v560
      %579 = vst.msk [vmem:[#allocation3 + $0x68] sm:$0xff] %vm524, %v561
      %580 = vst.msk [vmem:[#allocation3 + $0x70] sm:$0xff] %vm524, %v562
      %581 = vst.msk [vmem:[#allocation3 + $0x78] sm:$0xff] %vm524, %v563
      %582 = vst.msk [vmem:[#allocation3 + $0x80] sm:$0xff] %vm524, %v564
      %583 = vst.msk [vmem:[#allocation3 + $0x88] sm:$0xff] %vm524, %v565
      %v584 = vld [vmem:[#allocation2 + $0x1] sm:$0xff]
      %v585 = vld [vmem:[#allocation2 + $0x9] sm:$0xff]
      %v586 = vld [vmem:[#allocation2 + $0x11] sm:$0xff]
      %v587 = vld [vmem:[#allocation2 + $0x19] sm:$0xff]
      %v588 = vld [vmem:[#allocation2 + $0x21] sm:$0xff]
      %v589 = vld [vmem:[#allocation2 + $0x29] sm:$0xff]
      %v590 = vld [vmem:[#allocation2 + $0x31] sm:$0xff]
      %v591 = vld [vmem:[#allocation2 + $0x39] sm:$0xff]
      %v592 = vld [vmem:[#allocation2 + $0x41] sm:$0xff]
      %v593 = vld [vmem:[#allocation2 + $0x49] sm:$0xff]
      %v594 = vld [vmem:[#allocation2 + $0x51] sm:$0xff]
      %v595 = vld [vmem:[#allocation2 + $0x59] sm:$0xff]
      %v596 = vld [vmem:[#allocation2 + $0x61] sm:$0xff]
      %v597 = vld [vmem:[#allocation2 + $0x69] sm:$0xff]
      %v598 = vld [vmem:[#allocation2 + $0x71] sm:$0xff]
      %v599 = vld [vmem:[#allocation2 + $0x79] sm:$0xff]
      %v600 = vld [vmem:[#allocation2 + $0x81] sm:$0xff]
      %v601 = vld [vmem:[#allocation2 + $0x89] sm:$0xff]
      %620 = vrot.lane.b32.xlu0 %v584, 8
      %v621 = vpop.permute.xlu0 %620
      %622 = vrot.lane.b32.xlu0 %v585, 8
      %v623 = vpop.permute.xlu0 %622
      %624 = vrot.lane.b32.xlu0 %v586, 8
      %v625 = vpop.permute.xlu0 %624
      %626 = vrot.lane.b32.xlu0 %v587, 8
      %v627 = vpop.permute.xlu0 %626
      %628 = vrot.lane.b32.xlu0 %v588, 8
      %v629 = vpop.permute.xlu0 %628
      %630 = vrot.lane.b32.xlu0 %v589, 8
      %v631 = vpop.permute.xlu0 %630
      %632 = vrot.lane.b32.xlu0 %v590, 8
      %v633 = vpop.permute.xlu0 %632
      %634 = vrot.lane.b32.xlu0 %v591, 8
      %v635 = vpop.permute.xlu0 %634
      %636 = vrot.lane.b32.xlu0 %v592, 8
      %v637 = vpop.permute.xlu0 %636
      %638 = vrot.lane.b32.xlu0 %v593, 8
      %v639 = vpop.permute.xlu0 %638
      %640 = vrot.lane.b32.xlu0 %v594, 8
      %v641 = vpop.permute.xlu0 %640
      %642 = vrot.lane.b32.xlu0 %v595, 8
      %v643 = vpop.permute.xlu0 %642
      %644 = vrot.lane.b32.xlu0 %v596, 8
      %v645 = vpop.permute.xlu0 %644
      %646 = vrot.lane.b32.xlu0 %v597, 8
      %v647 = vpop.permute.xlu0 %646
      %648 = vrot.lane.b32.xlu0 %v598, 8
      %v649 = vpop.permute.xlu0 %648
      %650 = vrot.lane.b32.xlu0 %v599, 8
      %v651 = vpop.permute.xlu0 %650
      %652 = vrot.lane.b32.xlu0 %v600, 8
      %v653 = vpop.permute.xlu0 %652
      %654 = vrot.lane.b32.xlu0 %v601, 8
      %v655 = vpop.permute.xlu0 %654
      %vm674 = vcmask 130112
      %675 = vst.msk [vmem:[#allocation3] sm:$0xff] %vm674, %v621
      %676 = vst.msk [vmem:[#allocation3 + $0x8] sm:$0xff] %vm674, %v623
      %677 = vst.msk [vmem:[#allocation3 + $0x10] sm:$0xff] %vm674, %v625
      %678 = vst.msk [vmem:[#allocation3 + $0x18] sm:$0xff] %vm674, %v627
      %679 = vst.msk [vmem:[#allocation3 + $0x20] sm:$0xff] %vm674, %v629
      %680 = vst.msk [vmem:[#allocation3 + $0x28] sm:$0xff] %vm674, %v631
      %681 = vst.msk [vmem:[#allocation3 + $0x30] sm:$0xff] %vm674, %v633
      %682 = vst.msk [vmem:[#allocation3 + $0x38] sm:$0xff] %vm674, %v635
      %683 = vst.msk [vmem:[#allocation3 + $0x40] sm:$0xff] %vm674, %v637
      %684 = vst.msk [vmem:[#allocation3 + $0x48] sm:$0xff] %vm674, %v639
      %685 = vst.msk [vmem:[#allocation3 + $0x50] sm:$0xff] %vm674, %v641
      %686 = vst.msk [vmem:[#allocation3 + $0x58] sm:$0xff] %vm674, %v643
      %687 = vst.msk [vmem:[#allocation3 + $0x60] sm:$0xff] %vm674, %v645
      %688 = vst.msk [vmem:[#allocation3 + $0x68] sm:$0xff] %vm674, %v647
      %689 = vst.msk [vmem:[#allocation3 + $0x70] sm:$0xff] %vm674, %v649
      %690 = vst.msk [vmem:[#allocation3 + $0x78] sm:$0xff] %vm674, %v651
      %691 = vst.msk [vmem:[#allocation3 + $0x80] sm:$0xff] %vm674, %v653
      %692 = vst.msk [vmem:[#allocation3 + $0x88] sm:$0xff] %vm674, %v655
      %v693 = vld [vmem:[#allocation2 + $0x2] sm:$0xff]
      %v694 = vld [vmem:[#allocation2 + $0xa] sm:$0xff]
      %v695 = vld [vmem:[#allocation2 + $0x12] sm:$0xff]
      %v696 = vld [vmem:[#allocation2 + $0x1a] sm:$0xff]
      %v697 = vld [vmem:[#allocation2 + $0x22] sm:$0xff]
      %v698 = vld [vmem:[#allocation2 + $0x2a] sm:$0xff]
      %v699 = vld [vmem:[#allocation2 + $0x32] sm:$0xff]
      %v700 = vld [vmem:[#allocation2 + $0x3a] sm:$0xff]
      %v701 = vld [vmem:[#allocation2 + $0x42] sm:$0xff]
      %v702 = vld [vmem:[#allocation2 + $0x4a] sm:$0xff]
      %v703 = vld [vmem:[#allocation2 + $0x52] sm:$0xff]
      %v704 = vld [vmem:[#allocation2 + $0x5a] sm:$0xff]
      %v705 = vld [vmem:[#allocation2 + $0x62] sm:$0xff]
      %v706 = vld [vmem:[#allocation2 + $0x6a] sm:$0xff]
      %v707 = vld [vmem:[#allocation2 + $0x72] sm:$0xff]
      %v708 = vld [vmem:[#allocation2 + $0x7a] sm:$0xff]
      %v709 = vld [vmem:[#allocation2 + $0x82] sm:$0xff]
      %v710 = vld [vmem:[#allocation2 + $0x8a] sm:$0xff]
      %729 = vrot.lane.b32.xlu0 %v693, 16
      %v730 = vpop.permute.xlu0 %729
      %731 = vrot.lane.b32.xlu0 %v694, 16
      %v732 = vpop.permute.xlu0 %731
      %733 = vrot.lane.b32.xlu0 %v695, 16
      %v734 = vpop.permute.xlu0 %733
      %735 = vrot.lane.b32.xlu0 %v696, 16
      %v736 = vpop.permute.xlu0 %735
      %737 = vrot.lane.b32.xlu0 %v697, 16
      %v738 = vpop.permute.xlu0 %737
      %739 = vrot.lane.b32.xlu0 %v698, 16
      %v740 = vpop.permute.xlu0 %739
      %741 = vrot.lane.b32.xlu0 %v699, 16
      %v742 = vpop.permute.xlu0 %741
      %743 = vrot.lane.b32.xlu0 %v700, 16
      %v744 = vpop.permute.xlu0 %743
      %745 = vrot.lane.b32.xlu0 %v701, 16
      %v746 = vpop.permute.xlu0 %745
      %747 = vrot.lane.b32.xlu0 %v702, 16
      %v748 = vpop.permute.xlu0 %747
      %749 = vrot.lane.b32.xlu0 %v703, 16
      %v750 = vpop.permute.xlu0 %749
      %751 = vrot.lane.b32.xlu0 %v704, 16
      %v752 = vpop.permute.xlu0 %751
      %753 = vrot.lane.b32.xlu0 %v705, 16
      %v754 = vpop.permute.xlu0 %753
      %755 = vrot.lane.b32.xlu0 %v706, 16
      %v756 = vpop.permute.xlu0 %755
      %757 = vrot.lane.b32.xlu0 %v707, 16
      %v758 = vpop.permute.xlu0 %757
      %759 = vrot.lane.b32.xlu0 %v708, 16
      %v760 = vpop.permute.xlu0 %759
      %761 = vrot.lane.b32.xlu0 %v709, 16
      %v762 = vpop.permute.xlu0 %761
      %763 = vrot.lane.b32.xlu0 %v710, 16
      %v764 = vpop.permute.xlu0 %763
      %vm783 = vcmask 195712
      %784 = vst.msk [vmem:[#allocation3] sm:$0xff] %vm783, %v730
      %785 = vst.msk [vmem:[#allocation3 + $0x8] sm:$0xff] %vm783, %v732
      %786 = vst.msk [vmem:[#allocation3 + $0x10] sm:$0xff] %vm783, %v734
      %787 = vst.msk [vmem:[#allocation3 + $0x18] sm:$0xff] %vm783, %v736
      %788 = vst.msk [vmem:[#allocation3 + $0x20] sm:$0xff] %vm783, %v738
      %789 = vst.msk [vmem:[#allocation3 + $0x28] sm:$0xff] %vm783, %v740
      %790 = vst.msk [vmem:[#allocation3 + $0x30] sm:$0xff] %vm783, %v742
      %791 = vst.msk [vmem:[#allocation3 + $0x38] sm:$0xff] %vm783, %v744
      %792 = vst.msk [vmem:[#allocation3 + $0x40] sm:$0xff] %vm783, %v746
      %793 = vst.msk [vmem:[#allocation3 + $0x48] sm:$0xff] %vm783, %v748
      %794 = vst.msk [vmem:[#allocation3 + $0x50] sm:$0xff] %vm783, %v750
      %795 = vst.msk [vmem:[#allocation3 + $0x58] sm:$0xff] %vm783, %v752
      %796 = vst.msk [vmem:[#allocation3 + $0x60] sm:$0xff] %vm783, %v754
      %797 = vst.msk [vmem:[#allocation3 + $0x68] sm:$0xff] %vm783, %v756
      %798 = vst.msk [vmem:[#allocation3 + $0x70] sm:$0xff] %vm783, %v758
      %799 = vst.msk [vmem:[#allocation3 + $0x78] sm:$0xff] %vm783, %v760
      %800 = vst.msk [vmem:[#allocation3 + $0x80] sm:$0xff] %vm783, %v762
      %801 = vst.msk [vmem:[#allocation3 + $0x88] sm:$0xff] %vm783, %v764
      %v802 = vld [vmem:[#allocation2 + $0x12] sm:$0xff]
      %v803 = vld [vmem:[#allocation2 + $0x1a] sm:$0xff]
      %v804 = vld [vmem:[#allocation2 + $0x22] sm:$0xff]
      %v805 = vld [vmem:[#allocation2 + $0x2a] sm:$0xff]
      %v806 = vld [vmem:[#allocation2 + $0x32] sm:$0xff]
      %v807 = vld [vmem:[#allocation2 + $0x3a] sm:$0xff]
      %v808 = vld [vmem:[#allocation2 + $0x42] sm:$0xff]
      %v809 = vld [vmem:[#allocation2 + $0x4a] sm:$0xff]
      %v810 = vld [vmem:[#allocation2 + $0x52] sm:$0xff]
      %v811 = vld [vmem:[#allocation2 + $0x5a] sm:$0xff]
      %v812 = vld [vmem:[#allocation2 + $0x62] sm:$0xff]
      %v813 = vld [vmem:[#allocation2 + $0x6a] sm:$0xff]
      %v814 = vld [vmem:[#allocation2 + $0x72] sm:$0xff]
      %v815 = vld [vmem:[#allocation2 + $0x7a] sm:$0xff]
      %v816 = vld [vmem:[#allocation2 + $0x82] sm:$0xff]
      %v817 = vld [vmem:[#allocation2 + $0x8a] sm:$0xff]
      %v818 = vld [vmem:[#allocation2 + $0x92] sm:$0xff]
      %v819 = vld [vmem:[#allocation2 + $0x9a] sm:$0xff]
      %838 = vrot.lane.b32.xlu0 %v802, 24
      %v839 = vpop.permute.xlu0 %838
      %840 = vrot.lane.b32.xlu0 %v803, 24
      %v841 = vpop.permute.xlu0 %840
      %842 = vrot.lane.b32.xlu0 %v804, 24
      %v843 = vpop.permute.xlu0 %842
      %844 = vrot.lane.b32.xlu0 %v805, 24
      %v845 = vpop.permute.xlu0 %844
      %846 = vrot.lane.b32.xlu0 %v806, 24
      %v847 = vpop.permute.xlu0 %846
      %848 = vrot.lane.b32.xlu0 %v807, 24
      %v849 = vpop.permute.xlu0 %848
      %850 = vrot.lane.b32.xlu0 %v808, 24
      %v851 = vpop.permute.xlu0 %850
      %852 = vrot.lane.b32.xlu0 %v809, 24
      %v853 = vpop.permute.xlu0 %852
      %854 = vrot.lane.b32.xlu0 %v810, 24
      %v855 = vpop.permute.xlu0 %854
      %856 = vrot.lane.b32.xlu0 %v811, 24
      %v857 = vpop.permute.xlu0 %856
      %858 = vrot.lane.b32.xlu0 %v812, 24
      %v859 = vpop.permute.xlu0 %858
      %860 = vrot.lane.b32.xlu0 %v813, 24
      %v861 = vpop.permute.xlu0 %860
      %862 = vrot.lane.b32.xlu0 %v814, 24
      %v863 = vpop.permute.xlu0 %862
      %864 = vrot.lane.b32.xlu0 %v815, 24
      %v865 = vpop.permute.xlu0 %864
      %866 = vrot.lane.b32.xlu0 %v816, 24
      %v867 = vpop.permute.xlu0 %866
      %868 = vrot.lane.b32.xlu0 %v817, 24
      %v869 = vpop.permute.xlu0 %868
      %870 = vrot.lane.b32.xlu0 %v818, 24
      %v871 = vpop.permute.xlu0 %870
      %872 = vrot.lane.b32.xlu0 %v819, 24
      %v873 = vpop.permute.xlu0 %872
      %vm892 = vcmask 261312
      %893 = vst.msk [vmem:[#allocation3] sm:$0xff] %vm892, %v839
      %894 = vst.msk [vmem:[#allocation3 + $0x8] sm:$0xff] %vm892, %v841
      %895 = vst.msk [vmem:[#allocation3 + $0x10] sm:$0xff] %vm892, %v843
      %896 = vst.msk [vmem:[#allocation3 + $0x18] sm:$0xff] %vm892, %v845
      %897 = vst.msk [vmem:[#allocation3 + $0x20] sm:$0xff] %vm892, %v847
      %898 = vst.msk [vmem:[#allocation3 + $0x28] sm:$0xff] %vm892, %v849
      %899 = vst.msk [vmem:[#allocation3 + $0x30] sm:$0xff] %vm892, %v851
      %900 = vst.msk [vmem:[#allocation3 + $0x38] sm:$0xff] %vm892, %v853
      %901 = vst.msk [vmem:[#allocation3 + $0x40] sm:$0xff] %vm892, %v855
      %902 = vst.msk [vmem:[#allocation3 + $0x48] sm:$0xff] %vm892, %v857
      %903 = vst.msk [vmem:[#allocation3 + $0x50] sm:$0xff] %vm892, %v859
      %904 = vst.msk [vmem:[#allocation3 + $0x58] sm:$0xff] %vm892, %v861
      %905 = vst.msk [vmem:[#allocation3 + $0x60] sm:$0xff] %vm892, %v863
      %906 = vst.msk [vmem:[#allocation3 + $0x68] sm:$0xff] %vm892, %v865
      %907 = vst.msk [vmem:[#allocation3 + $0x70] sm:$0xff] %vm892, %v867
      %908 = vst.msk [vmem:[#allocation3 + $0x78] sm:$0xff] %vm892, %v869
      %909 = vst.msk [vmem:[#allocation3 + $0x80] sm:$0xff] %vm892, %v871
      %910 = vst.msk [vmem:[#allocation3 + $0x88] sm:$0xff] %vm892, %v873
      %v911 = vld [vmem:[#allocation2 + $0x13] sm:$0xff]
      %v912 = vld [vmem:[#allocation2 + $0x1b] sm:$0xff]
      %v913 = vld [vmem:[#allocation2 + $0x23] sm:$0xff]
      %v914 = vld [vmem:[#allocation2 + $0x2b] sm:$0xff]
      %v915 = vld [vmem:[#allocation2 + $0x33] sm:$0xff]
      %v916 = vld [vmem:[#allocation2 + $0x3b] sm:$0xff]
      %v917 = vld [vmem:[#allocation2 + $0x43] sm:$0xff]
      %v918 = vld [vmem:[#allocation2 + $0x4b] sm:$0xff]
      %v919 = vld [vmem:[#allocation2 + $0x53] sm:$0xff]
      %v920 = vld [vmem:[#allocation2 + $0x5b] sm:$0xff]
      %v921 = vld [vmem:[#allocation2 + $0x63] sm:$0xff]
      %v922 = vld [vmem:[#allocation2 + $0x6b] sm:$0xff]
      %v923 = vld [vmem:[#allocation2 + $0x73] sm:$0xff]
      %v924 = vld [vmem:[#allocation2 + $0x7b] sm:$0xff]
      %v925 = vld [vmem:[#allocation2 + $0x83] sm:$0xff]
      %v926 = vld [vmem:[#allocation2 + $0x8b] sm:$0xff]
      %v927 = vld [vmem:[#allocation2 + $0x93] sm:$0xff]
      %v928 = vld [vmem:[#allocation2 + $0x9b] sm:$0xff]
      %947 = vrot.lane.b32.xlu0 %v911, 32
      %v948 = vpop.permute.xlu0 %947
      %949 = vrot.lane.b32.xlu0 %v912, 32
      %v950 = vpop.permute.xlu0 %949
      %951 = vrot.lane.b32.xlu0 %v913, 32
      %v952 = vpop.permute.xlu0 %951
      %953 = vrot.lane.b32.xlu0 %v914, 32
      %v954 = vpop.permute.xlu0 %953
      %955 = vrot.lane.b32.xlu0 %v915, 32
      %v956 = vpop.permute.xlu0 %955
      %957 = vrot.lane.b32.xlu0 %v916, 32
      %v958 = vpop.permute.xlu0 %957
      %959 = vrot.lane.b32.xlu0 %v917, 32
      %v960 = vpop.permute.xlu0 %959
      %961 = vrot.lane.b32.xlu0 %v918, 32
      %v962 = vpop.permute.xlu0 %961
      %963 = vrot.lane.b32.xlu0 %v919, 32
      %v964 = vpop.permute.xlu0 %963
      %965 = vrot.lane.b32.xlu0 %v920, 32
      %v966 = vpop.permute.xlu0 %965
      %967 = vrot.lane.b32.xlu0 %v921, 32
      %v968 = vpop.permute.xlu0 %967
      %969 = vrot.lane.b32.xlu0 %v922, 32
      %v970 = vpop.permute.xlu0 %969
      %971 = vrot.lane.b32.xlu0 %v923, 32
      %v972 = vpop.permute.xlu0 %971
      %973 = vrot.lane.b32.xlu0 %v924, 32
      %v974 = vpop.permute.xlu0 %973
      %975 = vrot.lane.b32.xlu0 %v925, 32
      %v976 = vpop.permute.xlu0 %975
      %977 = vrot.lane.b32.xlu0 %v926, 32
      %v978 = vpop.permute.xlu0 %977
      %979 = vrot.lane.b32.xlu0 %v927, 32
      %v980 = vpop.permute.xlu0 %979
      %981 = vrot.lane.b32.xlu0 %v928, 32
      %v982 = vpop.permute.xlu0 %981
      %vm1001 = vcmask 326912
      %1002 = vst.msk [vmem:[#allocation3] sm:$0xff] %vm1001, %v948
      %1003 = vst.msk [vmem:[#allocation3 + $0x8] sm:$0xff] %vm1001, %v950
      %1004 = vst.msk [vmem:[#allocation3 + $0x10] sm:$0xff] %vm1001, %v952
      %1005 = vst.msk [vmem:[#allocation3 + $0x18] sm:$0xff] %vm1001, %v954
      %1006 = vst.msk [vmem:[#allocation3 + $0x20] sm:$0xff] %vm1001, %v956
      %1007 = vst.msk [vmem:[#allocation3 + $0x28] sm:$0xff] %vm1001, %v958
      %1008 = vst.msk [vmem:[#allocation3 + $0x30] sm:$0xff] %vm1001, %v960
      %1009 = vst.msk [vmem:[#allocation3 + $0x38] sm:$0xff] %vm1001, %v962
      %1010 = vst.msk [vmem:[#allocation3 + $0x40] sm:$0xff] %vm1001, %v964
      %1011 = vst.msk [vmem:[#allocation3 + $0x48] sm:$0xff] %vm1001, %v966
      %1012 = vst.msk [vmem:[#allocation3 + $0x50] sm:$0xff] %vm1001, %v968
      %1013 = vst.msk [vmem:[#allocation3 + $0x58] sm:$0xff] %vm1001, %v970
      %1014 = vst.msk [vmem:[#allocation3 + $0x60] sm:$0xff] %vm1001, %v972
      %1015 = vst.msk [vmem:[#allocation3 + $0x68] sm:$0xff] %vm1001, %v974
      %1016 = vst.msk [vmem:[#allocation3 + $0x70] sm:$0xff] %vm1001, %v976
      %1017 = vst.msk [vmem:[#allocation3 + $0x78] sm:$0xff] %vm1001, %v978
      %1018 = vst.msk [vmem:[#allocation3 + $0x80] sm:$0xff] %vm1001, %v980
      %1019 = vst.msk [vmem:[#allocation3 + $0x88] sm:$0xff] %vm1001, %v982
      %v1020 = vld [vmem:[#allocation2 + $0x14] sm:$0xff]
      %v1021 = vld [vmem:[#allocation2 + $0x1c] sm:$0xff]
      %v1022 = vld [vmem:[#allocation2 + $0x24] sm:$0xff]
      %v1023 = vld [vmem:[#allocation2 + $0x2c] sm:$0xff]
      %v1024 = vld [vmem:[#allocation2 + $0x34] sm:$0xff]
      %v1025 = vld [vmem:[#allocation2 + $0x3c] sm:$0xff]
      %v1026 = vld [vmem:[#allocation2 + $0x44] sm:$0xff]
      %v1027 = vld [vmem:[#allocation2 + $0x4c] sm:$0xff]
      %v1028 = vld [vmem:[#allocation2 + $0x54] sm:$0xff]
      %v1029 = vld [vmem:[#allocation2 + $0x5c] sm:$0xff]
      %v1030 = vld [vmem:[#allocation2 + $0x64] sm:$0xff]
      %v1031 = vld [vmem:[#allocation2 + $0x6c] sm:$0xff]
      %v1032 = vld [vmem:[#allocation2 + $0x74] sm:$0xff]
      %v1033 = vld [vmem:[#allocation2 + $0x7c] sm:$0xff]
      %v1034 = vld [vmem:[#allocation2 + $0x84] sm:$0xff]
      %v1035 = vld [vmem:[#allocation2 + $0x8c] sm:$0xff]
      %v1036 = vld [vmem:[#allocation2 + $0x94] sm:$0xff]
      %v1037 = vld [vmem:[#allocation2 + $0x9c] sm:$0xff]
      %1056 = vrot.lane.b32.xlu0 %v1020, 40
      %v1057 = vpop.permute.xlu0 %1056
      %1058 = vrot.lane.b32.xlu0 %v1021, 40
      %v1059 = vpop.permute.xlu0 %1058
      %1060 = vrot.lane.b32.xlu0 %v1022, 40
      %v1061 = vpop.permute.xlu0 %1060
      %1062 = vrot.lane.b32.xlu0 %v1023, 40
      %v1063 = vpop.permute.xlu0 %1062
      %1064 = vrot.lane.b32.xlu0 %v1024, 40
      %v1065 = vpop.permute.xlu0 %1064
      %1066 = vrot.lane.b32.xlu0 %v1025, 40
      %v1067 = vpop.permute.xlu0 %1066
      %1068 = vrot.lane.b32.xlu0 %v1026, 40
      %v1069 = vpop.permute.xlu0 %1068
      %1070 = vrot.lane.b32.xlu0 %v1027, 40
      %v1071 = vpop.permute.xlu0 %1070
      %1072 = vrot.lane.b32.xlu0 %v1028, 40
      %v1073 = vpop.permute.xlu0 %1072
      %1074 = vrot.lane.b32.xlu0 %v1029, 40
      %v1075 = vpop.permute.xlu0 %1074
      %1076 = vrot.lane.b32.xlu0 %v1030, 40
      %v1077 = vpop.permute.xlu0 %1076
      %1078 = vrot.lane.b32.xlu0 %v1031, 40
      %v1079 = vpop.permute.xlu0 %1078
      %1080 = vrot.lane.b32.xlu0 %v1032, 40
      %v1081 = vpop.permute.xlu0 %1080
      %1082 = vrot.lane.b32.xlu0 %v1033, 40
      %v1083 = vpop.permute.xlu0 %1082
      %1084 = vrot.lane.b32.xlu0 %v1034, 40
      %v1085 = vpop.permute.xlu0 %1084
      %1086 = vrot.lane.b32.xlu0 %v1035, 40
      %v1087 = vpop.permute.xlu0 %1086
      %1088 = vrot.lane.b32.xlu0 %v1036, 40
      %v1089 = vpop.permute.xlu0 %1088
      %1090 = vrot.lane.b32.xlu0 %v1037, 40
      %v1091 = vpop.permute.xlu0 %1090
      %vm1110 = vcmask 392512
      %1111 = vst.msk [vmem:[#allocation3] sm:$0xff] %vm1110, %v1057
      %1112 = vst.msk [vmem:[#allocation3 + $0x8] sm:$0xff] %vm1110, %v1059
      %1113 = vst.msk [vmem:[#allocation3 + $0x10] sm:$0xff] %vm1110, %v1061
      %1114 = vst.msk [vmem:[#allocation3 + $0x18] sm:$0xff] %vm1110, %v1063
      %1115 = vst.msk [vmem:[#allocation3 + $0x20] sm:$0xff] %vm1110, %v1065
      %1116 = vst.msk [vmem:[#allocation3 + $0x28] sm:$0xff] %vm1110, %v1067
      %1117 = vst.msk [vmem:[#allocation3 + $0x30] sm:$0xff] %vm1110, %v1069
      %1118 = vst.msk [vmem:[#allocation3 + $0x38] sm:$0xff] %vm1110, %v1071
      %1119 = vst.msk [vmem:[#allocation3 + $0x40] sm:$0xff] %vm1110, %v1073
      %1120 = vst.msk [vmem:[#allocation3 + $0x48] sm:$0xff] %vm1110, %v1075
      %1121 = vst.msk [vmem:[#allocation3 + $0x50] sm:$0xff] %vm1110, %v1077
      %1122 = vst.msk [vmem:[#allocation3 + $0x58] sm:$0xff] %vm1110, %v1079
      %1123 = vst.msk [vmem:[#allocation3 + $0x60] sm:$0xff] %vm1110, %v1081
      %1124 = vst.msk [vmem:[#allocation3 + $0x68] sm:$0xff] %vm1110, %v1083
      %1125 = vst.msk [vmem:[#allocation3 + $0x70] sm:$0xff] %vm1110, %v1085
      %1126 = vst.msk [vmem:[#allocation3 + $0x78] sm:$0xff] %vm1110, %v1087
      %1127 = vst.msk [vmem:[#allocation3 + $0x80] sm:$0xff] %vm1110, %v1089
      %1128 = vst.msk [vmem:[#allocation3 + $0x88] sm:$0xff] %vm1110, %v1091
      %v1129 = vld [vmem:[#allocation2 + $0x24] sm:$0xff]
      %v1130 = vld [vmem:[#allocation2 + $0x2c] sm:$0xff]
      %v1131 = vld [vmem:[#allocation2 + $0x34] sm:$0xff]
      %v1132 = vld [vmem:[#allocation2 + $0x3c] sm:$0xff]
      %v1133 = vld [vmem:[#allocation2 + $0x44] sm:$0xff]
      %v1134 = vld [vmem:[#allocation2 + $0x4c] sm:$0xff]
      %v1135 = vld [vmem:[#allocation2 + $0x54] sm:$0xff]
      %v1136 = vld [vmem:[#allocation2 + $0x5c] sm:$0xff]
      %v1137 = vld [vmem:[#allocation2 + $0x64] sm:$0xff]
      %v1138 = vld [vmem:[#allocation2 + $0x6c] sm:$0xff]
      %v1139 = vld [vmem:[#allocation2 + $0x74] sm:$0xff]
      %v1140 = vld [vmem:[#allocation2 + $0x7c] sm:$0xff]
      %v1141 = vld [vmem:[#allocation2 + $0x84] sm:$0xff]
      %v1142 = vld [vmem:[#allocation2 + $0x8c] sm:$0xff]
      %v1143 = vld [vmem:[#allocation2 + $0x94] sm:$0xff]
      %v1144 = vld [vmem:[#allocation2 + $0x9c] sm:$0xff]
      %v1145 = vld [vmem:[#allocation2 + $0xa4] sm:$0xff]
      %v1146 = vld [vmem:[#allocation2 + $0xac] sm:$0xff]
      %1165 = vrot.lane.b32.xlu0 %v1129, 48
      %v1166 = vpop.permute.xlu0 %1165
      %1167 = vrot.lane.b32.xlu0 %v1130, 48
      %v1168 = vpop.permute.xlu0 %1167
      %1169 = vrot.lane.b32.xlu0 %v1131, 48
      %v1170 = vpop.permute.xlu0 %1169
      %1171 = vrot.lane.b32.xlu0 %v1132, 48
      %v1172 = vpop.permute.xlu0 %1171
      %1173 = vrot.lane.b32.xlu0 %v1133, 48
      %v1174 = vpop.permute.xlu0 %1173
      %1175 = vrot.lane.b32.xlu0 %v1134, 48
      %v1176 = vpop.permute.xlu0 %1175
      %1177 = vrot.lane.b32.xlu0 %v1135, 48
      %v1178 = vpop.permute.xlu0 %1177
      %1179 = vrot.lane.b32.xlu0 %v1136, 48
      %v1180 = vpop.permute.xlu0 %1179
      %1181 = vrot.lane.b32.xlu0 %v1137, 48
      %v1182 = vpop.permute.xlu0 %1181
      %1183 = vrot.lane.b32.xlu0 %v1138, 48
      %v1184 = vpop.permute.xlu0 %1183
      %1185 = vrot.lane.b32.xlu0 %v1139, 48
      %v1186 = vpop.permute.xlu0 %1185
      %1187 = vrot.lane.b32.xlu0 %v1140, 48
      %v1188 = vpop.permute.xlu0 %1187
      %1189 = vrot.lane.b32.xlu0 %v1141, 48
      %v1190 = vpop.permute.xlu0 %1189
      %1191 = vrot.lane.b32.xlu0 %v1142, 48
      %v1192 = vpop.permute.xlu0 %1191
      %1193 = vrot.lane.b32.xlu0 %v1143, 48
      %v1194 = vpop.permute.xlu0 %1193
      %1195 = vrot.lane.b32.xlu0 %v1144, 48
      %v1196 = vpop.permute.xlu0 %1195
      %1197 = vrot.lane.b32.xlu0 %v1145, 48
      %v1198 = vpop.permute.xlu0 %1197
      %1199 = vrot.lane.b32.xlu0 %v1146, 48
      %v1200 = vpop.permute.xlu0 %1199
      %vm1219 = vcmask 458112
      %1220 = vst.msk [vmem:[#allocation3] sm:$0xff] %vm1219, %v1166
      %1221 = vst.msk [vmem:[#allocation3 + $0x8] sm:$0xff] %vm1219, %v1168
      %1222 = vst.msk [vmem:[#allocation3 + $0x10] sm:$0xff] %vm1219, %v1170
      %1223 = vst.msk [vmem:[#allocation3 + $0x18] sm:$0xff] %vm1219, %v1172
      %1224 = vst.msk [vmem:[#allocation3 + $0x20] sm:$0xff] %vm1219, %v1174
      %1225 = vst.msk [vmem:[#allocation3 + $0x28] sm:$0xff] %vm1219, %v1176
      %1226 = vst.msk [vmem:[#allocation3 + $0x30] sm:$0xff] %vm1219, %v1178
      %1227 = vst.msk [vmem:[#allocation3 + $0x38] sm:$0xff] %vm1219, %v1180
      %1228 = vst.msk [vmem:[#allocation3 + $0x40] sm:$0xff] %vm1219, %v1182
      %1229 = vst.msk [vmem:[#allocation3 + $0x48] sm:$0xff] %vm1219, %v1184
      %1230 = vst.msk [vmem:[#allocation3 + $0x50] sm:$0xff] %vm1219, %v1186
      %1231 = vst.msk [vmem:[#allocation3 + $0x58] sm:$0xff] %vm1219, %v1188
      %1232 = vst.msk [vmem:[#allocation3 + $0x60] sm:$0xff] %vm1219, %v1190
      %1233 = vst.msk [vmem:[#allocation3 + $0x68] sm:$0xff] %vm1219, %v1192
      %1234 = vst.msk [vmem:[#allocation3 + $0x70] sm:$0xff] %vm1219, %v1194
      %1235 = vst.msk [vmem:[#allocation3 + $0x78] sm:$0xff] %vm1219, %v1196
      %1236 = vst.msk [vmem:[#allocation3 + $0x80] sm:$0xff] %vm1219, %v1198
      %1237 = vst.msk [vmem:[#allocation3 + $0x88] sm:$0xff] %vm1219, %v1200
      %v1238 = vld [vmem:[#allocation2 + $0x25] sm:$0xff]
      %v1239 = vld [vmem:[#allocation2 + $0x2d] sm:$0xff]
      %v1240 = vld [vmem:[#allocation2 + $0x35] sm:$0xff]
      %v1241 = vld [vmem:[#allocation2 + $0x3d] sm:$0xff]
      %v1242 = vld [vmem:[#allocation2 + $0x45] sm:$0xff]
      %v1243 = vld [vmem:[#allocation2 + $0x4d] sm:$0xff]
      %v1244 = vld [vmem:[#allocation2 + $0x55] sm:$0xff]
      %v1245 = vld [vmem:[#allocation2 + $0x5d] sm:$0xff]
      %v1246 = vld [vmem:[#allocation2 + $0x65] sm:$0xff]
      %v1247 = vld [vmem:[#allocation2 + $0x6d] sm:$0xff]
      %v1248 = vld [vmem:[#allocation2 + $0x75] sm:$0xff]
      %v1249 = vld [vmem:[#allocation2 + $0x7d] sm:$0xff]
      %v1250 = vld [vmem:[#allocation2 + $0x85] sm:$0xff]
      %v1251 = vld [vmem:[#allocation2 + $0x8d] sm:$0xff]
      %v1252 = vld [vmem:[#allocation2 + $0x95] sm:$0xff]
      %v1253 = vld [vmem:[#allocation2 + $0x9d] sm:$0xff]
      %v1254 = vld [vmem:[#allocation2 + $0xa5] sm:$0xff]
      %v1255 = vld [vmem:[#allocation2 + $0xad] sm:$0xff]
      %1274 = vrot.lane.b32.xlu0 %v1238, 56
      %v1275 = vpop.permute.xlu0 %1274
      %1276 = vrot.lane.b32.xlu0 %v1239, 56
      %v1277 = vpop.permute.xlu0 %1276
      %1278 = vrot.lane.b32.xlu0 %v1240, 56
      %v1279 = vpop.permute.xlu0 %1278
      %1280 = vrot.lane.b32.xlu0 %v1241, 56
      %v1281 = vpop.permute.xlu0 %1280
      %1282 = vrot.lane.b32.xlu0 %v1242, 56
      %v1283 = vpop.permute.xlu0 %1282
      %1284 = vrot.lane.b32.xlu0 %v1243, 56
      %v1285 = vpop.permute.xlu0 %1284
      %1286 = vrot.lane.b32.xlu0 %v1244, 56
      %v1287 = vpop.permute.xlu0 %1286
      %1288 = vrot.lane.b32.xlu0 %v1245, 56
      %v1289 = vpop.permute.xlu0 %1288
      %1290 = vrot.lane.b32.xlu0 %v1246, 56
      %v1291 = vpop.permute.xlu0 %1290
      %1292 = vrot.lane.b32.xlu0 %v1247, 56
      %v1293 = vpop.permute.xlu0 %1292
      %1294 = vrot.lane.b32.xlu0 %v1248, 56
      %v1295 = vpop.permute.xlu0 %1294
      %1296 = vrot.lane.b32.xlu0 %v1249, 56
      %v1297 = vpop.permute.xlu0 %1296
      %1298 = vrot.lane.b32.xlu0 %v1250, 56
      %v1299 = vpop.permute.xlu0 %1298
      %1300 = vrot.lane.b32.xlu0 %v1251, 56
      %v1301 = vpop.permute.xlu0 %1300
      %1302 = vrot.lane.b32.xlu0 %v1252, 56
      %v1303 = vpop.permute.xlu0 %1302
      %1304 = vrot.lane.b32.xlu0 %v1253, 56
      %v1305 = vpop.permute.xlu0 %1304
      %1306 = vrot.lane.b32.xlu0 %v1254, 56
      %v1307 = vpop.permute.xlu0 %1306
      %1308 = vrot.lane.b32.xlu0 %v1255, 56
      %v1309 = vpop.permute.xlu0 %1308
      %vm1328 = vcmask 523712
      %1329 = vst.msk [vmem:[#allocation3] sm:$0xff] %vm1328, %v1275
      %1330 = vst.msk [vmem:[#allocation3 + $0x8] sm:$0xff] %vm1328, %v1277
      %1331 = vst.msk [vmem:[#allocation3 + $0x10] sm:$0xff] %vm1328, %v1279
      %1332 = vst.msk [vmem:[#allocation3 + $0x18] sm:$0xff] %vm1328, %v1281
      %1333 = vst.msk [vmem:[#allocation3 + $0x20] sm:$0xff] %vm1328, %v1283
      %1334 = vst.msk [vmem:[#allocation3 + $0x28] sm:$0xff] %vm1328, %v1285
      %1335 = vst.msk [vmem:[#allocation3 + $0x30] sm:$0xff] %vm1328, %v1287
      %1336 = vst.msk [vmem:[#allocation3 + $0x38] sm:$0xff] %vm1328, %v1289
      %1337 = vst.msk [vmem:[#allocation3 + $0x40] sm:$0xff] %vm1328, %v1291
      %1338 = vst.msk [vmem:[#allocation3 + $0x48] sm:$0xff] %vm1328, %v1293
      %1339 = vst.msk [vmem:[#allocation3 + $0x50] sm:$0xff] %vm1328, %v1295
      %1340 = vst.msk [vmem:[#allocation3 + $0x58] sm:$0xff] %vm1328, %v1297
      %1341 = vst.msk [vmem:[#allocation3 + $0x60] sm:$0xff] %vm1328, %v1299
      %1342 = vst.msk [vmem:[#allocation3 + $0x68] sm:$0xff] %vm1328, %v1301
      %1343 = vst.msk [vmem:[#allocation3 + $0x70] sm:$0xff] %vm1328, %v1303
      %1344 = vst.msk [vmem:[#allocation3 + $0x78] sm:$0xff] %vm1328, %v1305
      %1345 = vst.msk [vmem:[#allocation3 + $0x80] sm:$0xff] %vm1328, %v1307
      %1346 = vst.msk [vmem:[#allocation3 + $0x88] sm:$0xff] %vm1328, %v1309
      %v1347 = vld [vmem:[#allocation2 + $0x26] sm:$0xff]
      %v1348 = vld [vmem:[#allocation2 + $0x2e] sm:$0xff]
      %v1349 = vld [vmem:[#allocation2 + $0x36] sm:$0xff]
      %v1350 = vld [vmem:[#allocation2 + $0x3e] sm:$0xff]
      %v1351 = vld [vmem:[#allocation2 + $0x46] sm:$0xff]
      %v1352 = vld [vmem:[#allocation2 + $0x4e] sm:$0xff]
      %v1353 = vld [vmem:[#allocation2 + $0x56] sm:$0xff]
      %v1354 = vld [vmem:[#allocation2 + $0x5e] sm:$0xff]
      %v1355 = vld [vmem:[#allocation2 + $0x66] sm:$0xff]
      %v1356 = vld [vmem:[#allocation2 + $0x6e] sm:$0xff]
      %v1357 = vld [vmem:[#allocation2 + $0x76] sm:$0xff]
      %v1358 = vld [vmem:[#allocation2 + $0x7e] sm:$0xff]
      %v1359 = vld [vmem:[#allocation2 + $0x86] sm:$0xff]
      %v1360 = vld [vmem:[#allocation2 + $0x8e] sm:$0xff]
      %v1361 = vld [vmem:[#allocation2 + $0x96] sm:$0xff]
      %v1362 = vld [vmem:[#allocation2 + $0x9e] sm:$0xff]
      %v1363 = vld [vmem:[#allocation2 + $0xa6] sm:$0xff]
      %v1364 = vld [vmem:[#allocation2 + $0xae] sm:$0xff]
      %1383 = vrot.lane.b32.xlu0 %v1347, 64
      %v1384 = vpop.permute.xlu0 %1383
      %1385 = vrot.lane.b32.xlu0 %v1348, 64
      %v1386 = vpop.permute.xlu0 %1385
      %1387 = vrot.lane.b32.xlu0 %v1349, 64
      %v1388 = vpop.permute.xlu0 %1387
      %1389 = vrot.lane.b32.xlu0 %v1350, 64
      %v1390 = vpop.permute.xlu0 %1389
      %1391 = vrot.lane.b32.xlu0 %v1351, 64
      %v1392 = vpop.permute.xlu0 %1391
      %1393 = vrot.lane.b32.xlu0 %v1352, 64
      %v1394 = vpop.permute.xlu0 %1393
      %1395 = vrot.lane.b32.xlu0 %v1353, 64
      %v1396 = vpop.permute.xlu0 %1395
      %1397 = vrot.lane.b32.xlu0 %v1354, 64
      %v1398 = vpop.permute.xlu0 %1397
      %1399 = vrot.lane.b32.xlu0 %v1355, 64
      %v1400 = vpop.permute.xlu0 %1399
      %1401 = vrot.lane.b32.xlu0 %v1356, 64
      %v1402 = vpop.permute.xlu0 %1401
      %1403 = vrot.lane.b32.xlu0 %v1357, 64
      %v1404 = vpop.permute.xlu0 %1403
      %1405 = vrot.lane.b32.xlu0 %v1358, 64
      %v1406 = vpop.permute.xlu0 %1405
      %1407 = vrot.lane.b32.xlu0 %v1359, 64
      %v1408 = vpop.permute.xlu0 %1407
      %1409 = vrot.lane.b32.xlu0 %v1360, 64
      %v1410 = vpop.permute.xlu0 %1409
      %1411 = vrot.lane.b32.xlu0 %v1361, 64
      %v1412 = vpop.permute.xlu0 %1411
      %1413 = vrot.lane.b32.xlu0 %v1362, 64
      %v1414 = vpop.permute.xlu0 %1413
      %1415 = vrot.lane.b32.xlu0 %v1363, 64
      %v1416 = vpop.permute.xlu0 %1415
      %1417 = vrot.lane.b32.xlu0 %v1364, 64
      %v1418 = vpop.permute.xlu0 %1417
      %vm1437 = vcmask 589312
      %1438 = vst.msk [vmem:[#allocation3] sm:$0xff] %vm1437, %v1384
      %1439 = vst.msk [vmem:[#allocation3 + $0x8] sm:$0xff] %vm1437, %v1386
      %1440 = vst.msk [vmem:[#allocation3 + $0x10] sm:$0xff] %vm1437, %v1388
      %1441 = vst.msk [vmem:[#allocation3 + $0x18] sm:$0xff] %vm1437, %v1390
      %1442 = vst.msk [vmem:[#allocation3 + $0x20] sm:$0xff] %vm1437, %v1392
      %1443 = vst.msk [vmem:[#allocation3 + $0x28] sm:$0xff] %vm1437, %v1394
      %1444 = vst.msk [vmem:[#allocation3 + $0x30] sm:$0xff] %vm1437, %v1396
      %1445 = vst.msk [vmem:[#allocation3 + $0x38] sm:$0xff] %vm1437, %v1398
      %1446 = vst.msk [vmem:[#allocation3 + $0x40] sm:$0xff] %vm1437, %v1400
      %1447 = vst.msk [vmem:[#allocation3 + $0x48] sm:$0xff] %vm1437, %v1402
      %1448 = vst.msk [vmem:[#allocation3 + $0x50] sm:$0xff] %vm1437, %v1404
      %1449 = vst.msk [vmem:[#allocation3 + $0x58] sm:$0xff] %vm1437, %v1406
      %1450 = vst.msk [vmem:[#allocation3 + $0x60] sm:$0xff] %vm1437, %v1408
      %1451 = vst.msk [vmem:[#allocation3 + $0x68] sm:$0xff] %vm1437, %v1410
      %1452 = vst.msk [vmem:[#allocation3 + $0x70] sm:$0xff] %vm1437, %v1412
      %1453 = vst.msk [vmem:[#allocation3 + $0x78] sm:$0xff] %vm1437, %v1414
      %1454 = vst.msk [vmem:[#allocation3 + $0x80] sm:$0xff] %vm1437, %v1416
      %1455 = vst.msk [vmem:[#allocation3 + $0x88] sm:$0xff] %vm1437, %v1418
      %v1456 = vld [vmem:[#allocation3] sm:$0xff]
      %v1457 = vld [vmem:[#allocation3 + $0x8] sm:$0xff]
      %v1458 = vld [vmem:[#allocation3 + $0x10] sm:$0xff]
      %v1459 = vld [vmem:[#allocation3 + $0x18] sm:$0xff]
      %v1460 = vld [vmem:[#allocation3 + $0x20] sm:$0xff]
      %v1461 = vld [vmem:[#allocation3 + $0x28] sm:$0xff]
      %v1462 = vld [vmem:[#allocation3 + $0x30] sm:$0xff]
      %v1463 = vld [vmem:[#allocation3 + $0x38] sm:$0xff]
      %v1464 = vld [vmem:[#allocation3 + $0x40] sm:$0xff]
      %v1465 = vld [vmem:[#allocation3 + $0x48] sm:$0xff]
      %v1466 = vld [vmem:[#allocation3 + $0x50] sm:$0xff]
      %v1467 = vld [vmem:[#allocation3 + $0x58] sm:$0xff]
      %v1468 = vld [vmem:[#allocation3 + $0x60] sm:$0xff]
      %v1469 = vld [vmem:[#allocation3 + $0x68] sm:$0xff]
      %v1470 = vld [vmem:[#allocation3 + $0x70] sm:$0xff]
      %v1471 = vld [vmem:[#allocation3 + $0x78] sm:$0xff]
      %v1472 = vld [vmem:[#allocation3 + $0x80] sm:$0xff]
      %v1473 = vld [vmem:[#allocation3 + $0x88] sm:$0xff]
      %v1474 = vld [vmem:[%s2] sm:$0xff]
      %v1475 = vld [vmem:[%s2 + $0x8] sm:$0xff]
      %v1476 = vld [vmem:[%s2 + $0x10] sm:$0xff]
      %v1477 = vld [vmem:[%s2 + $0x18] sm:$0xff]
      %v1478 = vld [vmem:[%s2 + $0x20] sm:$0xff]
      %v1479 = vld [vmem:[%s2 + $0x28] sm:$0xff]
      %v1480 = vld [vmem:[%s2 + $0x30] sm:$0xff]
      %v1481 = vld [vmem:[%s2 + $0x38] sm:$0xff]
      %v1482 = vld [vmem:[%s2 + $0x40] sm:$0xff]
      %v1483 = vld [vmem:[%s3] sm:$0x1]
      %v1485 = vlaneseq
      %v1486 = vshrl.u32 %v1485, 7
      %v1487 = vsub.s32 0, %v1486
      %v1488 = vrot.slane %v1483, %v1487
      %vm1490 = vcmask 588800
      %v1492 = vsel %vm1490, %v1456, 0
      %v1495 = vsel %vm1490, %v1457, 0
      %v1498 = vsel %vm1490, %v1458, 0
      %v1501 = vsel %vm1490, %v1459, 0
      %v1504 = vsel %vm1490, %v1460, 0
      %v1507 = vsel %vm1490, %v1461, 0
      %v1510 = vsel %vm1490, %v1462, 0
      %v1513 = vsel %vm1490, %v1463, 0
      %v1516 = vsel %vm1490, %v1464, 0
      %v1519 = vsel %vm1490, %v1465, 0
      %v1522 = vsel %vm1490, %v1466, 0
      %v1525 = vsel %vm1490, %v1467, 0
      %v1528 = vsel %vm1490, %v1468, 0
      %v1531 = vsel %vm1490, %v1469, 0
      %v1534 = vsel %vm1490, %v1470, 0
      %v1537 = vsel %vm1490, %v1471, 0
      %v1540 = vsel %vm1490, %v1472, 0
      %v1543 = vsel %vm1490, %v1473, 0
      %1545 = vmatprep.subr.mxu0 0.0
      %1546 = vmatpush1.msra.mxu0 %v1474
      %1547 = vmatprep.subr.mxu0 0.0
      %1548 = vmatpush1.msra.mxu0 %v1475
      %1549 = vmatprep.subr.mxu0 0.0
      %1550 = vmatpush1.msra.mxu0 %v1476
      %1551 = vmatprep.subr.mxu0 0.0
      %1552 = vmatpush1.msra.mxu0 %v1477
      %1553 = vmatprep.subr.mxu0 0.0
      %1554 = vmatpush1.msra.mxu0 %v1478
      %1555 = vmatprep.subr.mxu0 0.0
      %1556 = vmatpush1.msra.mxu0 %v1479
      %1557 = vmatprep.subr.mxu0 0.0
      %1558 = vmatpush1.msra.mxu0 %v1480
      %1559 = vmatprep.subr.mxu0 0.0
      %1560 = vmatpush1.msra.mxu0 %v1481
      %1561 = vmatprep.subr.mxu0 0.0
      %1562 = vmatpush1.msra.mxu0 %v1482
      %1563 = vmatprep.subr.mxu0 0.0
      %1564 = vmatpush1.msra.mxu0 0.0
      %1565 = vmatprep.subr.mxu0 0.0
      %1566 = vmatpush1.msra.mxu0 0.0
      %1567 = vmatprep.subr.mxu0 0.0
      %1568 = vmatpush1.msra.mxu0 0.0
      %1569 = vmatprep.subr.mxu0 0.0
      %1570 = vmatpush1.msra.mxu0 0.0
      %1571 = vmatprep.subr.mxu0 0.0
      %1572 = vmatpush1.msra.mxu0 0.0
      %1573 = vmatprep.subr.mxu0 0.0
      %1574 = vmatpush1.msra.mxu0 0.0
      %1575 = vmatprep.subr.mxu0 0.0
      %1576 = vmatpush1.msra.mxu0 0.0
      %1577 = vmatprep.subr.mxu0 0.0
      %1578 = vmatpush1.msra.mxu0 0.0
      %1579 = vmatprep.subr.mxu0 0.0
      %1580 = vmatpush1.msra.mxu0 0.0
      %1581 = vmatprep.subr.mxu0 0.0
      %1582 = vmatpush1.msra.mxu0 0.0
      %1583 = vmatprep.subr.mxu0 0.0
      %1584 = vmatpush1.msra.mxu0 0.0
      %1585 = vmatprep.subr.mxu0 0.0
      %1586 = vmatpush1.msra.mxu0 0.0
      %1587 = vmatprep.subr.mxu0 0.0
      %1588 = vmatpush1.msra.mxu0 0.0
      %1589 = vmatprep.subr.mxu0 0.0
      %1590 = vmatpush1.msra.mxu0 0.0
      %1591 = vmatprep.subr.mxu0 0.0
      %1592 = vmatpush1.msra.mxu0 0.0
      %1593 = vmatprep.subr.mxu0 0.0
      %1594 = vmatpush1.msra.mxu0 0.0
      %1595 = vmatprep.subr.mxu0 0.0
      %1596 = vmatpush1.msra.mxu0 0.0
      %1597 = vmatprep.subr.mxu0 0.0
      %1598 = vmatpush1.msra.mxu0 0.0
      %1599 = vmatprep.subr.mxu0 0.0
      %1600 = vmatpush1.msra.mxu0 0.0
      %1601 = vmatprep.subr.mxu0 0.0
      %1602 = vmatpush1.msra.mxu0 0.0
      %1603 = vmatprep.subr.mxu0 0.0
      %1604 = vmatpush1.msra.mxu0 0.0
      %1605 = vmatprep.subr.mxu0 0.0
      %1606 = vmatpush1.msra.mxu0 0.0
      %1607 = vmatprep.subr.mxu0 0.0
      %1608 = vmatpush1.msra.mxu0 0.0
      %1609 = vmatprep.mubr.f32.mxu0 0.0
      %1610 = vmatmul.mubr.f32.gmra.mrb[0].mxu0 %v1492
      %v1611 = vpop.f32.mrb[0].mxu0
      %v1612 = vadd.f32 %v1488, %v1611
      %v1613 = vpop.f32.mrb[0].mxu0
      %1614 = vmatprep.mubr.f32.mxu0 0.0
      %1615 = vmatmul.mubr.f32.gmra.mrb[0].mxu0 %v1495
      %v1616 = vpop.f32.mrb[0].mxu0
      %v1617 = vadd.f32 %v1488, %v1616
      %v1618 = vpop.f32.mrb[0].mxu0
      %1619 = vmatprep.mubr.f32.mxu0 0.0
      %1620 = vmatmul.mubr.f32.gmra.mrb[0].mxu0 %v1498
      %v1621 = vpop.f32.mrb[0].mxu0
      %v1622 = vadd.f32 %v1488, %v1621
      %v1623 = vpop.f32.mrb[0].mxu0
      %1624 = vmatprep.mubr.f32.mxu0 0.0
      %1625 = vmatmul.mubr.f32.gmra.mrb[0].mxu0 %v1501
      %v1626 = vpop.f32.mrb[0].mxu0
      %v1627 = vadd.f32 %v1488, %v1626
      %v1628 = vpop.f32.mrb[0].mxu0
      %1629 = vmatprep.mubr.f32.mxu0 0.0
      %1630 = vmatmul.mubr.f32.gmra.mrb[0].mxu0 %v1504
      %v1631 = vpop.f32.mrb[0].mxu0
      %v1632 = vadd.f32 %v1488, %v1631
      %v1633 = vpop.f32.mrb[0].mxu0
      %1634 = vmatprep.mubr.f32.mxu0 0.0
      %1635 = vmatmul.mubr.f32.gmra.mrb[0].mxu0 %v1507
      %v1636 = vpop.f32.mrb[0].mxu0
      %v1637 = vadd.f32 %v1488, %v1636
      %v1638 = vpop.f32.mrb[0].mxu0
      %1639 = vmatprep.mubr.f32.mxu0 0.0
      %1640 = vmatmul.mubr.f32.gmra.mrb[0].mxu0 %v1510
      %v1641 = vpop.f32.mrb[0].mxu0
      %v1642 = vadd.f32 %v1488, %v1641
      %v1643 = vpop.f32.mrb[0].mxu0
      %1644 = vmatprep.mubr.f32.mxu0 0.0
      %1645 = vmatmul.mubr.f32.gmra.mrb[0].mxu0 %v1513
      %v1646 = vpop.f32.mrb[0].mxu0
      %v1647 = vadd.f32 %v1488, %v1646
      %v1648 = vpop.f32.mrb[0].mxu0
      %1649 = vmatprep.mubr.f32.mxu0 0.0
      %1650 = vmatmul.mubr.f32.gmra.mrb[0].mxu0 %v1516
      %v1651 = vpop.f32.mrb[0].mxu0
      %v1652 = vadd.f32 %v1488, %v1651
      %v1653 = vpop.f32.mrb[0].mxu0
      %1654 = vmatprep.mubr.f32.mxu0 0.0
      %1655 = vmatmul.mubr.f32.gmra.mrb[0].mxu0 %v1519
      %v1656 = vpop.f32.mrb[0].mxu0
      %v1657 = vadd.f32 %v1488, %v1656
      %v1658 = vpop.f32.mrb[0].mxu0
      %1659 = vmatprep.mubr.f32.mxu0 0.0
      %1660 = vmatmul.mubr.f32.gmra.mrb[0].mxu0 %v1522
      %v1661 = vpop.f32.mrb[0].mxu0
      %v1662 = vadd.f32 %v1488, %v1661
      %v1663 = vpop.f32.mrb[0].mxu0
      %1664 = vmatprep.mubr.f32.mxu0 0.0
      %1665 = vmatmul.mubr.f32.gmra.mrb[0].mxu0 %v1525
      %v1666 = vpop.f32.mrb[0].mxu0
      %v1667 = vadd.f32 %v1488, %v1666
      %v1668 = vpop.f32.mrb[0].mxu0
      %1669 = vmatprep.mubr.f32.mxu0 0.0
      %1670 = vmatmul.mubr.f32.gmra.mrb[0].mxu0 %v1528
      %v1671 = vpop.f32.mrb[0].mxu0
      %v1672 = vadd.f32 %v1488, %v1671
      %v1673 = vpop.f32.mrb[0].mxu0
      %1674 = vmatprep.mubr.f32.mxu0 0.0
      %1675 = vmatmul.mubr.f32.gmra.mrb[0].mxu0 %v1531
      %v1676 = vpop.f32.mrb[0].mxu0
      %v1677 = vadd.f32 %v1488, %v1676
      %v1678 = vpop.f32.mrb[0].mxu0
      %1679 = vmatprep.mubr.f32.mxu0 0.0
      %1680 = vmatmul.mubr.f32.gmra.mrb[0].mxu0 %v1534
      %v1681 = vpop.f32.mrb[0].mxu0
      %v1682 = vadd.f32 %v1488, %v1681
      %v1683 = vpop.f32.mrb[0].mxu0
      %1684 = vmatprep.mubr.f32.mxu0 0.0
      %1685 = vmatmul.mubr.f32.gmra.mrb[0].mxu0 %v1537
      %v1686 = vpop.f32.mrb[0].mxu0
      %v1687 = vadd.f32 %v1488, %v1686
      %v1688 = vpop.f32.mrb[0].mxu0
      %1689 = vmatprep.mubr.f32.mxu0 0.0
      %1690 = vmatmul.mubr.f32.gmra.mrb[0].mxu0 %v1540
      %v1691 = vpop.f32.mrb[0].mxu0
      %v1692 = vadd.f32 %v1488, %v1691
      %v1693 = vpop.f32.mrb[0].mxu0
      %1694 = vmatprep.mubr.f32.mxu0 0.0
      %1695 = vmatmul.mubr.f32.gmra.mrb[0].mxu0 %v1543
      %v1696 = vpop.f32.mrb[0].mxu0
      %v1697 = vadd.f32 %v1488, %v1696
      %v1698 = vpop.f32.mrb[0].mxu0
      %1699 = vdwg.mxu0
      %v1700 = vmax.f32 %v1612, 0.0
      %v1701 = vmax.f32 %v1617, 0.0
      %v1702 = vmax.f32 %v1622, 0.0
      %v1703 = vmax.f32 %v1627, 0.0
      %v1704 = vmax.f32 %v1632, 0.0
      %v1705 = vmax.f32 %v1637, 0.0
      %v1706 = vmax.f32 %v1642, 0.0
      %v1707 = vmax.f32 %v1647, 0.0
      %v1708 = vmax.f32 %v1652, 0.0
      %v1709 = vmax.f32 %v1657, 0.0
      %v1710 = vmax.f32 %v1662, 0.0
      %v1711 = vmax.f32 %v1667, 0.0
      %v1712 = vmax.f32 %v1672, 0.0
      %v1713 = vmax.f32 %v1677, 0.0
      %v1714 = vmax.f32 %v1682, 0.0
      %v1715 = vmax.f32 %v1687, 0.0
      %v1716 = vmax.f32 %v1692, 0.0
      %v1717 = vmax.f32 %v1697, 0.0
      %vm1718 = vcmask 261120
      %1719 = vst.msk [vmem:[%s219] sm:$0xff] %vm1718, %v1700
      %1720 = vst.msk [vmem:[%s219 + $0x8] sm:$0xff] %vm1718, %v1701
      %1721 = vst.msk [vmem:[%s219 + $0x10] sm:$0xff] %vm1718, %v1702
      %1722 = vst.msk [vmem:[%s219 + $0x18] sm:$0xff] %vm1718, %v1703
      %1723 = vst.msk [vmem:[%s219 + $0x20] sm:$0xff] %vm1718, %v1704
      %1724 = vst.msk [vmem:[%s219 + $0x28] sm:$0xff] %vm1718, %v1705
      %1725 = vst.msk [vmem:[%s219 + $0x30] sm:$0xff] %vm1718, %v1706
      %1726 = vst.msk [vmem:[%s219 + $0x38] sm:$0xff] %vm1718, %v1707
      %1727 = vst.msk [vmem:[%s219 + $0x40] sm:$0xff] %vm1718, %v1708
      %1728 = vst.msk [vmem:[%s219 + $0x48] sm:$0xff] %vm1718, %v1709
      %1729 = vst.msk [vmem:[%s219 + $0x50] sm:$0xff] %vm1718, %v1710
      %1730 = vst.msk [vmem:[%s219 + $0x58] sm:$0xff] %vm1718, %v1711
      %1731 = vst.msk [vmem:[%s219 + $0x60] sm:$0xff] %vm1718, %v1712
      %1732 = vst.msk [vmem:[%s219 + $0x68] sm:$0xff] %vm1718, %v1713
      %1733 = vst.msk [vmem:[%s219 + $0x70] sm:$0xff] %vm1718, %v1714
      %1734 = vst.msk [vmem:[%s219 + $0x78] sm:$0xff] %vm1718, %v1715
      %1735 = vst.msk [vmem:[%s219 + $0x80] sm:$0xff] %vm1718, %v1716
      %1736 = vst.msk [vmem:[%s219 + $0x88] sm:$0xff] %vm1718, %v1717
      %s1737 = smul.u32 18, %s20
      %p1738 = scmp.lt.s32.totalorder %s19, 1
      %s1739 = scalar_select %p1738, %s19, 1
      %p1740 = scmp.lt.s32.totalorder %s1737, 35
      %s1741 = scalar_select %p1740, %s1737, 35
      %s1742 = smul.addr %s1739, 36
      %s1743 = sadd.s32 %s1741, %s1742
      %s1744 = smul.addr %s1743, 8
      %s1745 = scalar_lea.vmem %s4, %s1744
      // Predicated region
      $region37: #{tpu_custom_call.1} parent=35 // pred_check
        %p1746 = pneg %p136
      $region38: #{tpu_custom_call.1} parent=35 // pred_check_branch
        %1748 = sbr.rel (%p1746) target = $region40
      $region39: #{tpu_custom_call.1} parent=35 // pred_region
        %s1749 = smul.u32 18, %s20
      $region40: #{tpu_custom_call.1} parent=35 // pred_fallthru
        _
    $region36: #{tpu_custom_call.1} parent=5 // pred_fallthru
      _
    %p1750 = scmp.le.s32.totalorder 2, %s10
    // Predicated region
    $region41: #{tpu_custom_call.1} parent=5 // pred_check
      %p1751 = pneg %p1750
    $region42: #{tpu_custom_call.1} parent=5 // pred_check_branch
      %1753 = sbr.rel (%p1751) target = $region44
    $region43: #{tpu_custom_call.1} parent=5 // pred_region
      %s1754 = ssub.s32 %s10, 2
      // Predicated region
      $region45: #{tpu_custom_call.1} parent=43 // pred_check
        %p1755 = pneg %p142
      $region46: #{tpu_custom_call.1} parent=43 // pred_check_branch
        %1757 = sbr.rel (%p1755) target = $region48
      $region47: #{tpu_custom_call.1} parent=43 // pred_region
        %s1758 = smul.u32 18, %s22
        %p1759 = scmp.lt.s32.totalorder %s21, 1
        %s1760 = scalar_select %p1759, %s21, 1
        %p1761 = scmp.lt.s32.totalorder %s1758, 35
        %s1762 = scalar_select %p1761, %s1758, 35
        %s1763 = smul.addr %s1760, 36
        %s1764 = sadd.s32 %s1762, %s1763
        %s1765 = smul.addr %s1764, 8
        %s1766 = scalar_lea.vmem %s4, %s1765
      $region48: #{tpu_custom_call.1} parent=43 // pred_fallthru
        _
    $region44: #{tpu_custom_call.1} parent=5 // pred_fallthru
      _
  $region6: #{tpu_custom_call.1} parent=0 // loop_footer
    %s14 = sadd.s32 1, %s10
  $region7: #{tpu_custom_call.1} parent=0 // loop_footer_branch
    %9 = sbr.rel target = $region3
  $region8: #{tpu_custom_call.1} parent=0 // loop_exit
    _

</llo_original>
